<compile_context>
chip_gen: v6e
topology: v6e:2x2x1
jax: 0.10.0
libtpu: 0.0.40
codegen_flags: <defaults>
</compile_context>

<pallas_src>
import functools

import jax
import jax.numpy as jnp
import numpy as np
from jax.experimental import pallas as pl
from jax.experimental.pallas import tpu as pltpu


def _capsule_routing_kernel(x_ref, w_ref, ebc_ref, o_ref, b_ref, s_ref, *,
                            num_unit, unit_size, in_unit, i_tile, batch):
    """One grid step = (routing iteration r, in_channel tile t).

    x_ref : [B, TI*K]          this tile's input capsules (lane-dense)
    w_ref : [TI*K, J*S]        this tile's weights (lane-dense)
    ebc_ref: [J, J*S]          0/1 selector e_bc[j, (j',s)] = (j == j')
    o_ref : [B, J*S]           squashed output; also holds v_j of the previous
                               sweep (constant block index -> VMEM-resident)
    b_ref : [n_tiles, J, TI]   routing logits b_ij, lane-dense in TI
    s_ref : [B, J*S]           s_j accumulator for the current sweep
    """
    f32 = jnp.float32
    J, S, K, TI, B = num_unit, unit_size, in_unit, i_tile, batch
    JS = J * S
    TIK = TI * K

    r = pl.program_id(0)          # routing iteration
    t = pl.program_id(1)          # in_channel tile
    n_r = pl.num_programs(0)
    n_t = pl.num_programs(1)
    del n_r  # (last iteration's agreement is skipped implicitly: applied lazily)

    x_tile = x_ref[...]           # [B, TIK]
    w_tile = w_ref[...]           # [TIK, JS]
    e_bc = ebc_ref[...]           # [J, JS]

    dn_c0c0 = (((0,), (0,)), ((), ()))   # contract axis 0 with axis 0
    dn_c1c1 = (((1,), (1,)), ((), ()))   # contract axis 1 with axis 1

    # ---------------- b_ij bookkeeping for this tile -----------------------
    @pl.when(r == 0)
    def _init_b():                                   # first sweep: b_ij = 0
        b_ref[t] = jnp.zeros((J, TI), f32)

    @pl.when(r > 0)
    def _agreement():
        # Lazy agreement update using the previous sweep's v_j (in o_ref):
        #   b[i,j] += (1/B) sum_{b,k,s} x[b,(i,k)] w[(i,k),(j,s)] v[b,(j,s)]
        # with u_hat never materialized:
        #   m[(i,k),(j,s)] = sum_b x[b,(i,k)] * v[b,(j,s)]     (MXU, depth B)
        v_prev = o_ref[...]                                           # [B, JS]
        m = jax.lax.dot_general(x_tile, v_prev, dn_c0c0,
                                preferred_element_type=f32)           # [TIK,JS]
        p = w_tile * m                                                # [TIK,JS]
        # sum over k: sublane reduce (no e_k selector matmul)
        pk = jnp.sum(p.reshape(TI, K, JS), axis=1)                    # [TI, JS]
        # sum over s within each j, produced directly in [J, TI] layout
        b_upd = jax.lax.dot_general(e_bc, pk, dn_c1c1,
                                    preferred_element_type=f32)       # [J, TI]
        b_ref[t] = b_ref[t] + b_upd * (1.0 / B)

    # -------- coupling coefficients c_ij = softmax_j(b_ij), [J, TI] --------
    b_tile = b_ref[t]                                                 # [J, TI]
    b_max = jnp.max(b_tile, axis=0, keepdims=True)
    exp_b = jnp.exp(b_tile - b_max)
    c = exp_b / jnp.sum(exp_b, axis=0, keepdims=True)                 # [J, TI]

    # -------- s_j partial sum: fold c into w, one deep MXU matmul ----------
    #   s[b,(j,s)] += sum_{i,k} x[b,(i,k)] * c[i,j] * w[(i,k),(j,s)]
    c_js = jax.lax.dot_general(c, e_bc, dn_c0c0,
                               preferred_element_type=f32)            # [TI, JS]
    # broadcast c over the in_unit (k) rows: VPU/sublane broadcast, no matmul
    c_full = jnp.broadcast_to(c_js[:, None, :], (TI, K, JS)).reshape(TIK, JS)
    s_part = jnp.dot(x_tile, w_tile * c_full,
                     preferred_element_type=f32)                      # [B, JS]

    @pl.when(t == 0)
    def _s_init():
        s_ref[...] = s_part

    @pl.when(t > 0)
    def _s_acc():
        s_ref[...] = s_ref[...] + s_part

    # -------- end of sweep: squash directly into the resident output -------
    @pl.when(t == n_t - 1)
    def _squash():
        s = s_ref[...]                                                # [B, JS]
        mag_sq = jax.lax.dot_general(s * s, e_bc, dn_c1c1,
                                     preferred_element_type=f32)      # [B, J]
        scale = (mag_sq / (1.0 + mag_sq)) * jax.lax.rsqrt(mag_sq + 1e-9)
        scale_js = jnp.dot(scale, e_bc, preferred_element_type=f32)   # [B, JS]
        o_ref[...] = (s * scale_js).astype(o_ref.dtype)


def _vmem_cap_bytes():
    """Physical VMEM of the current generation (v5e/v6e: 128 MiB, v7x: 64 MiB)."""
    try:
        info = pltpu.get_tpu_info()
        cap = getattr(info, "vmem_capacity_bytes", None)
        if cap:
            return int(cap)
    except Exception:
        pass
    return 64 * 1024 * 1024   # conservative default (v7x per-TensorCore)


def _estimate_vmem_bytes(batch, in_unit, js, i_tile, n_tiles, num_unit):
    """Rough VMEM footprint (f32) for a given in_channel tile size."""
    tik = i_tile * in_unit
    blocks = 2 * (batch * tik + tik * js) * 4        # x/w blocks, double buffered
    blocks += 2 * num_unit * js * 4                  # e_bc selector
    slabs = (2 * batch * js + n_tiles * num_unit * i_tile + batch * js) * 4
    intermediates = 3 * tik * js * 4 + 2 * batch * js * 4   # w*c, m, p, ...
    return blocks + slabs + intermediates


def _pick_i_tile(in_channel, in_unit, batch, js, num_unit, budget_bytes):
    """Prefer full residency (single tile => x/w DMA'd once for ALL routing
    iterations).  Otherwise, the largest divisor tile with t*in_unit a
    multiple of 128 (lane alignment of the [B, I*K] blocks) that fits."""
    def est(t):
        return _estimate_vmem_bytes(batch, in_unit, js, t,
                                    in_channel // t, num_unit)
    if est(in_channel) <= budget_bytes:
        return in_channel
    best = None
    for t in range(1, in_channel):
        if in_channel % t:
            continue
        if (t * in_unit) % 128:
            continue
        if est(t) <= budget_bytes:
            best = t
    return best if best is not None else in_channel


def capsule_layer_forward(x, weight, num_routing, i_tile=None):
    """Pallas equivalent of CapsuleLayer.forward (the routing hot path).

    x:      [B, in_unit, in_channel]                      float32
    weight: [1, in_channel, num_unit, unit_size, in_unit] float32
    returns [B, num_unit, unit_size, 1]                   float32
    """
    batch, in_unit, in_channel = x.shape
    _, _, num_unit, unit_size, _ = weight.shape
    js = num_unit * unit_size

    vmem_cap = _vmem_cap_bytes()
    budget = int(0.70 * vmem_cap)
    if i_tile is None:
        i_tile = _pick_i_tile(in_channel, in_unit, batch, js, num_unit, budget)
    assert in_channel % i_tile == 0, (in_channel, i_tile)
    n_i_tiles = in_channel // i_tile
    tik = i_tile * in_unit
    if n_i_tiles > 1:
        assert tik % 128 == 0, (i_tile, in_unit)   # lane alignment of x blocks

    est = _estimate_vmem_bytes(batch, in_unit, js, i_tile, n_i_tiles, num_unit)
    vmem_limit = int(min(max(32 << 20, 2 * est + (8 << 20)),
                         int(0.72 * vmem_cap)))

    # Glue (layout prep outside the kernel):
    #   x:      [B, K, I] -> [B, I, K] -> [B, I*K]       (lane-dense, sliceable)
    #   weight: [I, J, S, K] -> [I, K, J, S] -> [I*K, J*S]
    x_flat = jnp.transpose(x, (0, 2, 1)).reshape(
        batch, in_channel * in_unit).astype(jnp.float32)
    w_flat = jnp.transpose(weight[0], (0, 3, 1, 2)).reshape(
        in_channel * in_unit, js).astype(jnp.float32)
    # 0/1 selector e_bc[j, (j',s)] = (j == j'): one vreg, resident in VMEM.
    e_bc = (jnp.arange(js, dtype=jnp.int32)[None, :] // unit_size
            == jnp.arange(num_unit, dtype=jnp.int32)[:, None]).astype(jnp.float32)

    kernel = functools.partial(
        _capsule_routing_kernel, num_unit=num_unit, unit_size=unit_size,
        in_unit=in_unit, i_tile=i_tile, batch=batch)

    v = pl.pallas_call(
        kernel,
        out_shape=jax.ShapeDtypeStruct((batch, js), jnp.float32),
        grid_spec=pltpu.PrefetchScalarGridSpec(
            num_scalar_prefetch=0,
            grid=(num_routing, n_i_tiles),
            in_specs=[
                pl.BlockSpec((batch, tik), lambda r, t: (0, t)),
                pl.BlockSpec((tik, js), lambda r, t: (t, 0)),
                pl.BlockSpec((num_unit, js), lambda r, t: (0, 0)),
            ],
            out_specs=pl.BlockSpec((batch, js), lambda r, t: (0, 0)),
            scratch_shapes=[
                pltpu.VMEM((n_i_tiles, num_unit, i_tile), jnp.float32),  # b_ij
                pltpu.VMEM((batch, js), jnp.float32),   # s_j accumulator
            ],
        ),
        compiler_params=pltpu.CompilerParams(
            # both axes carry state (b_ij across routing, s_j across tiles)
            dimension_semantics=("arbitrary", "arbitrary"),
            vmem_limit_bytes=vmem_limit,
        ),
    )(x_flat, w_flat, e_bc)

    # [B, J*S] -> [B, J, S, 1]  == torch's v_j.squeeze(1)
    return v.reshape(batch, num_unit, unit_size)[..., None]


def capsule_layer_reference(x, weight, num_routing):
    """Pure-JAX transliteration of the torch routing() for validation (f32,
    HIGHEST precision -- the kernel runs at default MXU precision, hence the
    looser tolerance in the test)."""
    batch = x.shape[0]
    _, in_channel, num_unit, unit_size, in_unit = weight.shape
    xt = jnp.transpose(x, (0, 2, 1))                                 # [B, I, K]
    x_st = jnp.stack([xt] * num_unit, axis=2)[..., None]             # [B,I,J,K,1]
    bw = jnp.concatenate([weight] * batch, axis=0)                   # [B,I,J,S,K]
    u_hat = jnp.matmul(bw, x_st,
                       precision=jax.lax.Precision.HIGHEST)          # [B,I,J,S,1]
    b_ij = jnp.zeros((1, in_channel, num_unit, 1), jnp.float32)
    v_j = None
    for _ in range(num_routing):
        c_ij = jax.nn.softmax(b_ij, axis=2)
        c_ij = jnp.concatenate([c_ij] * batch, axis=0)[..., None]    # [B,I,J,1,1]
        s_j = jnp.sum(c_ij * u_hat, axis=1, keepdims=True)           # [B,1,J,S,1]
        mag_sq = jnp.sum(s_j * s_j, axis=3, keepdims=True)
        mag = jnp.sqrt(mag_sq)
        v_j = (mag_sq / (1.0 + mag_sq)) * (s_j / mag)
        v_j1 = jnp.concatenate([v_j] * in_channel, axis=1)           # [B,I,J,S,1]
        u_vj1 = jnp.matmul(jnp.swapaxes(u_hat, 3, 4), v_j1,
                           precision=jax.lax.Precision.HIGHEST)      # [B,I,J,1,1]
        u_vj1 = jnp.mean(jnp.squeeze(u_vj1, axis=4), axis=0, keepdims=True)
        b_ij = b_ij + u_vj1
    return jnp.squeeze(v_j, axis=1)                                  # [B,J,S,1]


# TODO(synk): the torch module's `mode == 'test'` branch writes n-gram /
# coupling-coefficient logs to files via `self.vocab`; host file I/O has no
# Pallas equivalent and is omitted (it does not affect the returned tensor).


if __name__ == "__main__":
    # Small shapes consistent with the forward pass (J*S = 128 lane-dense).
    batch = 8
    in_unit = 8        # input capsule dimensionality (K)
    in_channel = 64    # number of input capsules (I; 1152 in the paper)
    num_unit = 8       # number of output capsules (J)
    unit_size = 16     # output capsule dimensionality (S)
    num_routing = 3

    key = jax.random.PRNGKey(0)
    kw, kx = jax.random.split(key)
    weight = jax.random.normal(
        kw, (1, in_channel, num_unit, unit_size, in_unit), jnp.float32)
    x = jax.random.normal(kx, (batch, in_unit, in_channel), jnp.float32)

    v_ref = jax.block_until_ready(
        capsule_layer_reference(x, weight, num_routing))

    # 1) default path: full residency (single in_channel tile, x/w DMA'd once)
    v_full = jax.block_until_ready(
        capsule_layer_forward(x, weight, num_routing))
    assert v_full.shape == (batch, num_unit, unit_size, 1), v_full.shape
    np.testing.assert_allclose(np.asarray(v_full), np.asarray(v_ref),
                               rtol=2e-2, atol=2e-2)

    # 2) tiled fallback path: 4 in_channel tiles (exercises the accumulator grid)
    v_tiled = jax.block_until_ready(
        capsule_layer_forward(x, weight, num_routing, i_tile=16))
    np.testing.assert_allclose(np.asarray(v_tiled), np.asarray(v_ref),
                               rtol=2e-2, atol=2e-2)

    print("KERNEL_OK")
</pallas_src>

<mosaic_0001>
module attributes {stable_mosaic.version = 11 : i64} {
  func.func @_capsule_routing_kernel(%arg0: i32, %arg1: i32, %arg2: memref<8x512xf32, #tpu.memory_space<vmem>>, %arg3: memref<512x128xf32, #tpu.memory_space<vmem>>, %arg4: memref<8x128xf32, #tpu.memory_space<vmem>>, %arg5: memref<8x128xf32, #tpu.memory_space<vmem>>, %arg6: memref<1x8x64xf32, #tpu.memory_space<vmem>>, %arg7: memref<8x128xf32, #tpu.memory_space<vmem>>) attributes {dimension_semantics = [#tpu.dimension_semantics<arbitrary>, #tpu.dimension_semantics<arbitrary>], iteration_bounds = array<i64: 3, 1>, scalar_prefetch = 0 : i64, scratch_operands = 2 : i64, tpu.core_type = #tpu.core_type<tc>, window_params = [{transform_indices = @transform_0, window_bounds = array<i64: 8, 512>}, {transform_indices = @transform_1, window_bounds = array<i64: 512, 128>}, {pipeline_mode = #tpu.pipeline_mode<synchronous>, transform_indices = @transform_2, window_bounds = array<i64: 8, 128>}, {pipeline_mode = #tpu.pipeline_mode<synchronous>, transform_indices = @transform_3, window_bounds = array<i64: 8, 128>}]} {
    %c0 = arith.constant 0 : index
    %c0_0 = arith.constant 0 : index
    %0 = vector.load %arg2[%c0, %c0_0] : memref<8x512xf32, #tpu.memory_space<vmem>>, vector<8x512xf32>
    %c0_1 = arith.constant 0 : index
    %c0_2 = arith.constant 0 : index
    %1 = vector.load %arg3[%c0_1, %c0_2] : memref<512x128xf32, #tpu.memory_space<vmem>>, vector<512x128xf32>
    %c0_3 = arith.constant 0 : index
    %c0_4 = arith.constant 0 : index
    %2 = vector.load %arg4[%c0_3, %c0_4] : memref<8x128xf32, #tpu.memory_space<vmem>>, vector<8x128xf32>
    %c0_i32 = arith.constant 0 : i32
    %3 = arith.cmpi eq, %arg0, %c0_i32 : i32
    %4 = arith.extui %3 : i1 to i32
    %c0_i32_5 = arith.constant 0 : i32
    %5 = arith.cmpi ne, %4, %c0_i32_5 : i32
    scf.if %5 {
      %cst_19 = arith.constant 0.000000e+00 : f32
      %37 = vector.broadcast %cst_19 : f32 to vector<8x64xf32>
      %38 = arith.index_cast %arg1 : i32 to index
      %c0_20 = arith.constant 0 : index
      %c0_21 = arith.constant 0 : index
      %39 = vector.load %arg6[%38, %c0_20, %c0_21] : memref<1x8x64xf32, #tpu.memory_space<vmem>>, vector<1x8x64xf32>
      %40 = vector.shape_cast %39 : vector<1x8x64xf32> to vector<8x64xf32>
      %41 = vector.shape_cast %37 : vector<8x64xf32> to vector<1x8x64xf32>
      tpu.vector_store %arg6[%38, %c0_20, %c0_21], %41 {strides = array<i32>} : memref<1x8x64xf32, #tpu.memory_space<vmem>>, vector<1x8x64xf32>,
    } else {
    }
    %c0_i32_6 = arith.constant 0 : i32
    %6 = arith.cmpi sgt, %arg0, %c0_i32_6 : i32
    %7 = arith.extui %6 : i1 to i32
    %c0_i32_7 = arith.constant 0 : i32
    %8 = arith.cmpi ne, %7, %c0_i32_7 : i32
    scf.if %8 {
      %c0_19 = arith.constant 0 : index
      %c0_20 = arith.constant 0 : index
      %37 = vector.load %arg5[%c0_19, %c0_20] : memref<8x128xf32, #tpu.memory_space<vmem>>, vector<8x128xf32>
      %cst_21 = arith.constant dense<0.000000e+00> : vector<512x128xf32>
      %38 = tpu.matmul %0, %37, %cst_21 {dimension_numbers = #tpu.dot_dimension_numbers<[0], [0], [1], [1], [0, 1, 1, 1], [], []>} : vector<8x512xf32>, vector<8x128xf32>, vector<512x128xf32> -> vector<512x128xf32>
      %39 = arith.mulf %1, %38 : vector<512x128xf32>
      %40 = vector.shape_cast %39 : vector<512x128xf32> to vector<64x8x128xf32>
      %cst_22 = arith.constant dense<0.000000e+00> : vector<64x128xf32>
      %41 = vector.multi_reduction <add>, %40, %cst_22 [1] : vector<64x8x128xf32> to vector<64x128xf32>
      %cst_23 = arith.constant dense<0.000000e+00> : vector<8x64xf32>
      %42 = tpu.matmul %2, %41, %cst_23 {dimension_numbers = #tpu.dot_dimension_numbers<[1], [1], [0], [0], [0, 0, 1, 0], [], []>} : vector<8x128xf32>, vector<64x128xf32>, vector<8x64xf32> -> vector<8x64xf32>
      %43 = arith.index_cast %arg1 : i32 to index
      %c0_24 = arith.constant 0 : index
      %c0_25 = arith.constant 0 : index
      %44 = vector.load %arg6[%43, %c0_24, %c0_25] : memref<1x8x64xf32, #tpu.memory_space<vmem>>, vector<1x8x64xf32>
      %45 = vector.shape_cast %44 : vector<1x8x64xf32> to vector<8x64xf32>
      %cst_26 = arith.constant 1.250000e-01 : f32
      %46 = vector.broadcast %cst_26 : f32 to vector<8x64xf32>
      %47 = arith.mulf %42, %46 : vector<8x64xf32>
      %48 = arith.addf %45, %47 : vector<8x64xf32>
      %49 = arith.index_cast %arg1 : i32 to index
      %c0_27 = arith.constant 0 : index
      %c0_28 = arith.constant 0 : index
      %50 = vector.load %arg6[%49, %c0_27, %c0_28] : memref<1x8x64xf32, #tpu.memory_space<vmem>>, vector<1x8x64xf32>
      %51 = vector.shape_cast %50 : vector<1x8x64xf32> to vector<8x64xf32>
      %52 = vector.shape_cast %48 : vector<8x64xf32> to vector<1x8x64xf32>
      tpu.vector_store %arg6[%49, %c0_27, %c0_28], %52 {strides = array<i32>} : memref<1x8x64xf32, #tpu.memory_space<vmem>>, vector<1x8x64xf32>,
    } else {
    }
    %9 = arith.index_cast %arg1 : i32 to index
    %c0_8 = arith.constant 0 : index
    %c0_9 = arith.constant 0 : index
    %10 = vector.load %arg6[%9, %c0_8, %c0_9] : memref<1x8x64xf32, #tpu.memory_space<vmem>>, vector<1x8x64xf32>
    %11 = vector.shape_cast %10 : vector<1x8x64xf32> to vector<8x64xf32>
    %cst = arith.constant dense<0xFF800000> : vector<64xf32>
    %12 = vector.multi_reduction <maximumf>, %11, %cst [0] : vector<8x64xf32> to vector<64xf32>
    %13 = vector.shape_cast %12 : vector<64xf32> to vector<1x64xf32>
    %14 = vector.broadcast %13 : vector<1x64xf32> to vector<8x64xf32>
    %15 = arith.subf %11, %14 : vector<8x64xf32>
    %16 = math.exp %15 : vector<8x64xf32>
    %cst_10 = arith.constant dense<0.000000e+00> : vector<64xf32>
    %17 = vector.multi_reduction <add>, %16, %cst_10 [0] : vector<8x64xf32> to vector<64xf32>
    %18 = vector.shape_cast %17 : vector<64xf32> to vector<1x64xf32>
    %19 = vector.broadcast %18 : vector<1x64xf32> to vector<8x64xf32>
    %20 = arith.divf %16, %19 : vector<8x64xf32>
    %cst_11 = arith.constant dense<0.000000e+00> : vector<64x128xf32>
    %21 = tpu.matmul %20, %2, %cst_11 {dimension_numbers = #tpu.dot_dimension_numbers<[0], [0], [1], [1], [0, 1, 1, 1], [], []>} : vector<8x64xf32>, vector<8x128xf32>, vector<64x128xf32> -> vector<64x128xf32>
    %22 = vector.shape_cast %21 : vector<64x128xf32> to vector<64x1x128xf32>
    %23 = vector.shape_cast %22 : vector<64x1x128xf32> to vector<64x1x128xf32>
    %24 = vector.broadcast %23 : vector<64x1x128xf32> to vector<64x8x128xf32>
    %25 = vector.shape_cast %24 : vector<64x8x128xf32> to vector<512x128xf32>
    %26 = arith.mulf %1, %25 : vector<512x128xf32>
    %cst_12 = arith.constant dense<0.000000e+00> : vector<8x128xf32>
    %27 = tpu.matmul %0, %26, %cst_12 {dimension_numbers = #tpu.dot_dimension_numbers<[1], [0], [0], [1], [0, 0, 1, 1], [], []>} : vector<8x512xf32>, vector<512x128xf32>, vector<8x128xf32> -> vector<8x128xf32>
    %c0_i32_13 = arith.constant 0 : i32
    %28 = arith.cmpi eq, %arg1, %c0_i32_13 : i32
    %29 = arith.extui %28 : i1 to i32
    %c0_i32_14 = arith.constant 0 : i32
    %30 = arith.cmpi ne, %29, %c0_i32_14 : i32
    scf.if %30 {
      %c0_19 = arith.constant 0 : index
      %c0_20 = arith.constant 0 : index
      %37 = vector.load %arg7[%c0_19, %c0_20] : memref<8x128xf32, #tpu.memory_space<vmem>>, vector<8x128xf32>
      tpu.vector_store %arg7[%c0_19, %c0_20], %27 {strides = array<i32>} : memref<8x128xf32, #tpu.memory_space<vmem>>, vector<8x128xf32>,
    } else {
    }
    %c0_i32_15 = arith.constant 0 : i32
    %31 = arith.cmpi sgt, %arg1, %c0_i32_15 : i32
    %32 = arith.extui %31 : i1 to i32
    %c0_i32_16 = arith.constant 0 : i32
    %33 = arith.cmpi ne, %32, %c0_i32_16 : i32
    scf.if %33 {
      %c0_19 = arith.constant 0 : index
      %c0_20 = arith.constant 0 : index
      %37 = vector.load %arg7[%c0_19, %c0_20] : memref<8x128xf32, #tpu.memory_space<vmem>>, vector<8x128xf32>
      %38 = arith.addf %37, %27 : vector<8x128xf32>
      %c0_21 = arith.constant 0 : index
      %c0_22 = arith.constant 0 : index
      %39 = vector.load %arg7[%c0_21, %c0_22] : memref<8x128xf32, #tpu.memory_space<vmem>>, vector<8x128xf32>
      tpu.vector_store %arg7[%c0_21, %c0_22], %38 {strides = array<i32>} : memref<8x128xf32, #tpu.memory_space<vmem>>, vector<8x128xf32>,
    } else {
    }
    %c0_i32_17 = arith.constant 0 : i32
    %34 = arith.cmpi eq, %arg1, %c0_i32_17 : i32
    %35 = arith.extui %34 : i1 to i32
    %c0_i32_18 = arith.constant 0 : i32
    %36 = arith.cmpi ne, %35, %c0_i32_18 : i32
    scf.if %36 {
      %c0_19 = arith.constant 0 : index
      %c0_20 = arith.constant 0 : index
      %37 = vector.load %arg7[%c0_19, %c0_20] : memref<8x128xf32, #tpu.memory_space<vmem>>, vector<8x128xf32>
      %38 = arith.mulf %37, %37 : vector<8x128xf32>
      %cst_21 = arith.constant dense<0.000000e+00> : vector<8x8xf32>
      %39 = tpu.matmul %38, %2, %cst_21 {dimension_numbers = #tpu.dot_dimension_numbers<[1], [1], [0], [0], [0, 0, 1, 0], [], []>} : vector<8x128xf32>, vector<8x128xf32>, vector<8x8xf32> -> vector<8x8xf32>
      %cst_22 = arith.constant 1.000000e+00 : f32
      %40 = vector.broadcast %cst_22 : f32 to vector<8x8xf32>
      %41 = arith.addf %40, %39 : vector<8x8xf32>
      %42 = arith.divf %39, %41 : vector<8x8xf32>
      %cst_23 = arith.constant 9.99999971E-10 : f32
      %43 = vector.broadcast %cst_23 : f32 to vector<8x8xf32>
      %44 = arith.addf %39, %43 : vector<8x8xf32>
      %45 = math.rsqrt %44 : vector<8x8xf32>
      %46 = arith.mulf %42, %45 : vector<8x8xf32>
      %cst_24 = arith.constant dense<0.000000e+00> : vector<8x128xf32>
      %47 = tpu.matmul %46, %2, %cst_24 {dimension_numbers = #tpu.dot_dimension_numbers<[1], [0], [0], [1], [0, 0, 1, 1], [], []>} : vector<8x8xf32>, vector<8x128xf32>, vector<8x128xf32> -> vector<8x128xf32>
      %48 = arith.mulf %37, %47 : vector<8x128xf32>
      %c0_25 = arith.constant 0 : index
      %c0_26 = arith.constant 0 : index
      %49 = vector.load %arg5[%c0_25, %c0_26] : memref<8x128xf32, #tpu.memory_space<vmem>>, vector<8x128xf32>
      tpu.vector_store %arg5[%c0_25, %c0_26], %48 {strides = array<i32>} : memref<8x128xf32, #tpu.memory_space<vmem>>, vector<8x128xf32>,
    } else {
    }
    return
  }
  func.func @transform_0(%arg0: i32, %arg1: i32) -> (i32, i32) {
    %c0_i32 = arith.constant 0 : i32
    %c0_i32_0 = arith.constant 0 : i32
    return %c0_i32, %arg1 : i32, i32
  }
  func.func @transform_1(%arg0: i32, %arg1: i32) -> (i32, i32) {
    %c0_i32 = arith.constant 0 : i32
    %c0_i32_0 = arith.constant 0 : i32
    return %arg1, %c0_i32 : i32, i32
  }
  func.func @transform_2(%arg0: i32, %arg1: i32) -> (i32, i32) {
    %c0_i32 = arith.constant 0 : i32
    %c0_i32_0 = arith.constant 0 : i32
    %c0_i32_1 = arith.constant 0 : i32
    return %c0_i32, %c0_i32_0 : i32, i32
  }
  func.func @transform_3(%arg0: i32, %arg1: i32) -> (i32, i32) {
    %c0_i32 = arith.constant 0 : i32
    %c0_i32_0 = arith.constant 0 : i32
    %c0_i32_1 = arith.constant 0 : i32
    return %c0_i32, %c0_i32_0 : i32, i32
  }
}

</mosaic_0001>

<llo_original>
// kernel: tpu_custom_call.1
$region0: #{tpu_custom_call.1}
  #allocation0 [shape = 'u32[]', space=smem, size = 0x4, offset = 0x4, fixed_abs, tag = 'smem constant byte address 0x4 - core index']
  #allocation1 [shape = 'u32[144,128]{1,0:T(1,128)}', space=vmem, size = 0x12000, scoped, tag = 'internal scratch']
  #allocation2 [shape = 'f32[1,8,64]{2,1,0:T(8,128)}', space=vmem, size = 0x1000, scoped, tag = 'scratch operand']
  #allocation3 [shape = 'f32[8,128]{1,0:T(8,128)}', space=vmem, size = 0x1000, scoped, tag = 'scratch operand']
  %s0 = inlined_call_operand.hbm [shape: f32[8,512], index: 0, kind: input, shape index: {}]
  %s1 = inlined_call_operand.hbm [shape: f32[512,128], index: 1, kind: input, shape index: {}]
  %s2 = inlined_call_operand.hbm [shape: f32[8,128], index: 2, kind: input, shape index: {}]
  %s3 = inlined_call_operand.hbm [shape: f32[8,128], index: 3, kind: output, shape index: {}]
  %s4 = sld [smem:[#allocation0]]
  $region77: #{tpu_custom_call.1} parent=0
    _
  %s6 = ssub.s32 1, %s4
  %s7 = scalar_select 0, %s6, %s4
  $region1: #{tpu_custom_call.1} parent=0
    #allocation4 [shape = 'u8[16384]{0}', space=vmem, size = 0x4000, scoped, tag = 'input window, operand 0, single buffered']
    #allocation5 [shape = 's32[2]{0}', space=sflag, size = 0x8, scoped, tag = 'scoped memory for tpu_custom_call.1']
    #allocation6 [shape = 's32[2]{0}', space=sflag, size = 0x8, scoped, tag = 'scoped memory for tpu_custom_call.1']
    #allocation7 [shape = 'u8[262144]{0}', space=vmem, size = 0x40000, scoped, tag = 'input window, operand 1, single buffered']
    #allocation8 [shape = 's32[1]{0}', space=sflag, size = 0x4, scoped, tag = 'scoped memory for tpu_custom_call.1']
    #allocation9 [shape = 'u8[4096]{0}', space=vmem, size = 0x1000, scoped, tag = 'input window, operand 2, single buffered']
    #allocation10 [shape = 'u8[4096]{0}', space=vmem, size = 0x1000, scoped, tag = 'output window, operand 0, single buffered']
    %8 = vsyncpa [#allocation5], 0
    %9 = vsyncpa [#allocation8], 0
    %10 = vsyncpa [#allocation6], 0
    loop: start=0, step=1, limit=5
    $region2: #{tpu_custom_call.1} parent=1 // loop_pre_header
      _
    $region3: #{tpu_custom_call.1} parent=1 // loop_header
      %s12 = sphi 0, %s16
      %p13 = scmp.ge.s32.totalorder %s12, 5
      %s19 = sphi 0, %s31
      %s20 = sphi 0, %s27
      %s21 = sphi 0, %s19
      %s22 = sphi 0, %s20
      %s23 = sphi 0, %s21
      %s24 = sphi 0, %s22
      %s34 = sphi 0, %s36
      %s37 = sphi 0, %s34
      %s38 = sphi 0, %s37
      %s54 = sphi 0, %s38
      %s60 = sphi 0, %s62
      %s63 = sphi 0, %s60
      %s64 = sphi 0, %s63
      %s80 = sphi 0, %s64
      %s84 = sphi 0, %s84
      %s86 = sphi 0, %s84
      %s87 = sphi 0, %s86
      %s101 = sphi 0, %s87
      %s105 = sphi 0, %s105
      %s107 = sphi 0, %s105
      %s108 = sphi 0, %s107
      %s122 = sphi 0, %s108
    $region4: #{tpu_custom_call.1} parent=1 // loop_header_branch
      %15 = sbr.rel (%p13) target = $region8
    $region5: #{tpu_custom_call.1} parent=1 // loop_body
      %s17 = ssub.s32 %s12, 1
      %s18 = ssub.s32 %s12, 2
      %s25 = sadd.s32 1, %s20
      %p26 = scmp.ge.s32.totalorder %s25, 1
      %s27 = scalar_select %p26, 0, %s25
      %s28 = sadd.s32 1, %s19
      %s29 = scalar_select %p26, %s28, %s19
      %p30 = scmp.ge.s32.totalorder %s29, 3
      %s31 = scalar_select %p30, 0, %s29
      %s32 = ssub.s32 %s20, %s27
      %p33 = scmp.eq.s32.totalorder %s32, 0
      %s35 = sadd.s32 %s34, 1
      %s36 = scalar_select %p33, %s34, %s35
      %p39 = pneg %p33
      %p40 = scmp.eq.s32.totalorder %s12, 2
      %p41 = por %p39, %p40
      %p42 = scmp.ne.s32.totalorder %s34, %s37
      %p43 = scmp.eq.s32.totalorder %s12, 0
      %p44 = por %p42, %p43
      %p45 = scmp.ne.s32.totalorder %s34, %s37
      %p46 = scmp.eq.s32.totalorder %s17, 2
      %p47 = por %p45, %p46
      %p48 = scmp.ne.s32.totalorder %s37, %s38
      %p49 = scmp.eq.s32.totalorder %s17, 0
      %p50 = por %p48, %p49
      %p51 = scmp.ne.s32.totalorder %s37, %s38
      %p52 = scmp.eq.s32.totalorder %s18, 2
      %p53 = por %p51, %p52
      %p55 = scmp.ne.s32.totalorder %s38, %s54
      %p56 = scmp.eq.s32.totalorder %s18, 0
      %p57 = por %p55, %p56
      %s58 = ssub.s32 %s20, %s27
      %p59 = scmp.eq.s32.totalorder %s58, 0
      %s61 = sadd.s32 %s60, 1
      %s62 = scalar_select %p59, %s60, %s61
      %p65 = pneg %p59
      %p66 = scmp.eq.s32.totalorder %s12, 2
      %p67 = por %p65, %p66
      %p68 = scmp.ne.s32.totalorder %s60, %s63
      %p69 = scmp.eq.s32.totalorder %s12, 0
      %p70 = por %p68, %p69
      %p71 = scmp.ne.s32.totalorder %s60, %s63
      %p72 = scmp.eq.s32.totalorder %s17, 2
      %p73 = por %p71, %p72
      %p74 = scmp.ne.s32.totalorder %s63, %s64
      %p75 = scmp.eq.s32.totalorder %s17, 0
      %p76 = por %p74, %p75
      %p77 = scmp.ne.s32.totalorder %s63, %s64
      %p78 = scmp.eq.s32.totalorder %s18, 2
      %p79 = por %p77, %p78
      %p81 = scmp.ne.s32.totalorder %s64, %s80
      %p82 = scmp.eq.s32.totalorder %s18, 0
      %p83 = por %p81, %p82
      %s85 = sadd.s32 %s84, 1
      %p88 = scmp.eq.s32.totalorder %s12, 2
      %p89 = scmp.ne.s32.totalorder %s84, %s86
      %p90 = scmp.eq.s32.totalorder %s12, 0
      %p91 = por %p89, %p90
      %p92 = scmp.ne.s32.totalorder %s84, %s86
      %p93 = scmp.eq.s32.totalorder %s17, 2
      %p94 = por %p92, %p93
      %p95 = scmp.ne.s32.totalorder %s86, %s87
      %p96 = scmp.eq.s32.totalorder %s17, 0
      %p97 = por %p95, %p96
      %p98 = scmp.ne.s32.totalorder %s86, %s87
      %p99 = scmp.eq.s32.totalorder %s18, 2
      %p100 = por %p98, %p99
      %p102 = scmp.ne.s32.totalorder %s87, %s101
      %p103 = scmp.eq.s32.totalorder %s18, 0
      %p104 = por %p102, %p103
      %s106 = sadd.s32 %s105, 1
      %p109 = scmp.eq.s32.totalorder %s12, 2
      %p110 = scmp.ne.s32.totalorder %s105, %s107
      %p111 = scmp.eq.s32.totalorder %s12, 0
      %p112 = por %p110, %p111
      %p113 = scmp.ne.s32.totalorder %s105, %s107
      %p114 = scmp.eq.s32.totalorder %s17, 2
      %p115 = por %p113, %p114
      %p116 = scmp.ne.s32.totalorder %s107, %s108
      %p117 = scmp.eq.s32.totalorder %s17, 0
      %p118 = por %p116, %p117
      %p119 = scmp.ne.s32.totalorder %s107, %s108
      %p120 = scmp.eq.s32.totalorder %s18, 2
      %p121 = por %p119, %p120
      %p123 = scmp.ne.s32.totalorder %s108, %s122
      %p124 = scmp.eq.s32.totalorder %s18, 0
      %p125 = por %p123, %p124
      %p126 = scmp.le.s32.totalorder 1, %s12
      %p127 = scmp.lt.s32.totalorder %s12, 4
      %p128 = pnand %p126, %p127
      %p129 = pneg %p128
      // Predicated region
      $region9: #{tpu_custom_call.1} parent=5 // pred_check
        _
      $region10: #{tpu_custom_call.1} parent=5 // pred_check_branch
        %131 = sbr.rel (%p128) target = $region12
      $region11: #{tpu_custom_call.1} parent=5 // pred_region
        %s132 = ssub.s32 %s12, 1
        // Predicated region
        $region13: #{tpu_custom_call.1} parent=11 // pred_check
          %p133 = pneg %p50
        $region14: #{tpu_custom_call.1} parent=11 // pred_check_branch
          %135 = sbr.rel (%p133) target = $region16
        $region15: #{tpu_custom_call.1} parent=11 // pred_region
          %s136 = smul.u32 4, %s22
          %s138 = ssub.s32 512, 512
          %139 = vsyncadd [#allocation5], %s138
          %s140 = smul.addr %s136, 128
          %s141 = scalar_lea.hbm %s0, %s140
          %s143 = sshll.u32 [#allocation4], 4
          %s144 = int_to_ptr.vmem [resolvable:$true] %s143
          %146 = dma.hbm_to_vmem [thread:$0]  %s141, 512, %s144, [#allocation5]
        $region16: #{tpu_custom_call.1} parent=11 // pred_fallthru
          _
        // Predicated region
        $region17: #{tpu_custom_call.1} parent=11 // pred_check
          %p147 = pneg %p76
        $region18: #{tpu_custom_call.1} parent=11 // pred_check_branch
          %149 = sbr.rel (%p147) target = $region20
        $region19: #{tpu_custom_call.1} parent=11 // pred_region
          %s150 = smul.u32 64, %s22
          %s152 = ssub.s32 8192, 8192
          %153 = vsyncadd [#allocation8], %s152
          %s154 = smul.addr %s150, 128
          %s155 = scalar_lea.hbm %s1, %s154
          %s156 = sshll.u32 [#allocation7], 4
          %s157 = int_to_ptr.vmem [resolvable:$true] %s156
          %162 = dma.hbm_to_vmem [thread:$0]  %s155, 8192, %s157, [#allocation8], 128, 128, 8
        $region20: #{tpu_custom_call.1} parent=11 // pred_fallthru
          _
        // Predicated region
        $region21: #{tpu_custom_call.1} parent=11 // pred_check
          %p163 = pneg %p97
        $region22: #{tpu_custom_call.1} parent=11 // pred_check_branch
          %165 = sbr.rel (%p163) target = $region24
        $region23: #{tpu_custom_call.1} parent=11 // pred_region
          %s167 = ssub.s32 128, 128
          %168 = vsyncadd [#allocation8], %s167
          %s170 = sshll.u32 [#allocation9], 4
          %s171 = int_to_ptr.vmem [resolvable:$true] %s170
          %173 = dma.hbm_to_vmem [thread:$0]  %s2, 128, %s171, [#allocation8]
        $region24: #{tpu_custom_call.1} parent=11 // pred_fallthru
          _
      $region12: #{tpu_custom_call.1} parent=5 // pred_fallthru
        _
      %p174 = scmp.lt.s32.totalorder %s12, 3
      // Predicated region
      $region25: #{tpu_custom_call.1} parent=5 // pred_check
        %p175 = pneg %p174
      $region26: #{tpu_custom_call.1} parent=5 // pred_check_branch
        %177 = sbr.rel (%p175) target = $region28
      $region27: #{tpu_custom_call.1} parent=5 // pred_region
        _
      $region28: #{tpu_custom_call.1} parent=5 // pred_fallthru
        _
      %p178 = scmp.le.s32.totalorder 1, %s12
      %p179 = scmp.lt.s32.totalorder %s12, 4
      %p180 = pnand %p178, %p179
      %p181 = pneg %p180
      // Predicated region
      $region29: #{tpu_custom_call.1} parent=5 // pred_check
        _
      $region30: #{tpu_custom_call.1} parent=5 // pred_check_branch
        %183 = sbr.rel (%p180) target = $region32
      $region31: #{tpu_custom_call.1} parent=5 // pred_region
        %s184 = ssub.s32 %s12, 1
        // Predicated region
        $region33: #{tpu_custom_call.1} parent=31 // pred_check
          %p185 = pneg %p50
        $region34: #{tpu_custom_call.1} parent=31 // pred_check_branch
          %187 = sbr.rel (%p185) target = $region36
        $region35: #{tpu_custom_call.1} parent=31 // pred_region
          %188 = dma.done [#allocation5], 512
        $region36: #{tpu_custom_call.1} parent=31 // pred_fallthru
          _
        // Predicated region
        $region37: #{tpu_custom_call.1} parent=31 // pred_check
          %p189 = pneg %p76
        $region38: #{tpu_custom_call.1} parent=31 // pred_check_branch
          %191 = sbr.rel (%p189) target = $region40
        $region39: #{tpu_custom_call.1} parent=31 // pred_region
          %192 = dma.done [#allocation8], 8192
        $region40: #{tpu_custom_call.1} parent=31 // pred_fallthru
          _
        // Predicated region
        $region41: #{tpu_custom_call.1} parent=31 // pred_check
          %p193 = pneg %p97
        $region42: #{tpu_custom_call.1} parent=31 // pred_check_branch
          %195 = sbr.rel (%p193) target = $region44
        $region43: #{tpu_custom_call.1} parent=31 // pred_region
          %196 = dma.done [#allocation8], 128
        $region44: #{tpu_custom_call.1} parent=31 // pred_fallthru
          _
        %p197 = pneg %p50
        %p198 = pneg %p47
        %p199 = pneg %p76
        %p200 = pneg %p73
        %p201 = pneg %p97
        %p202 = pneg %p94
        %p203 = pneg %p118
        %p204 = pneg %p115
        %s205 = smul.u32 4, %s22
        %s206 = smul.u32 64, %s22
        %v207 = vld [vmem:[#allocation4] sm:$0xff]
        %v208 = vld [vmem:[#allocation4 + $0x8] sm:$0xff]
        %v209 = vld [vmem:[#allocation4 + $0x10] sm:$0xff]
        %v210 = vld [vmem:[#allocation4 + $0x18] sm:$0xff]
        %v211 = vld [vmem:[#allocation7] sm:$0xff]
        %v212 = vld [vmem:[#allocation7 + $0x8] sm:$0xff]
        %v213 = vld [vmem:[#allocation7 + $0x10] sm:$0xff]
        %v214 = vld [vmem:[#allocation7 + $0x18] sm:$0xff]
        %v215 = vld [vmem:[#allocation7 + $0x20] sm:$0xff]
        %v216 = vld [vmem:[#allocation7 + $0x28] sm:$0xff]
        %v217 = vld [vmem:[#allocation7 + $0x30] sm:$0xff]
        %v218 = vld [vmem:[#allocation7 + $0x38] sm:$0xff]
        %v219 = vld [vmem:[#allocation7 + $0x40] sm:$0xff]
        %v220 = vld [vmem:[#allocation7 + $0x48] sm:$0xff]
        %v221 = vld [vmem:[#allocation7 + $0x50] sm:$0xff]
        %v222 = vld [vmem:[#allocation7 + $0x58] sm:$0xff]
        %v223 = vld [vmem:[#allocation7 + $0x60] sm:$0xff]
        %v224 = vld [vmem:[#allocation7 + $0x68] sm:$0xff]
        %v225 = vld [vmem:[#allocation7 + $0x70] sm:$0xff]
        %v226 = vld [vmem:[#allocation7 + $0x78] sm:$0xff]
        %v227 = vld [vmem:[#allocation7 + $0x80] sm:$0xff]
        %v228 = vld [vmem:[#allocation7 + $0x88] sm:$0xff]
        %v229 = vld [vmem:[#allocation7 + $0x90] sm:$0xff]
        %v230 = vld [vmem:[#allocation7 + $0x98] sm:$0xff]
        %v231 = vld [vmem:[#allocation7 + $0xa0] sm:$0xff]
        %v232 = vld [vmem:[#allocation7 + $0xa8] sm:$0xff]
        %v233 = vld [vmem:[#allocation7 + $0xb0] sm:$0xff]
        %v234 = vld [vmem:[#allocation7 + $0xb8] sm:$0xff]
        %v235 = vld [vmem:[#allocation7 + $0xc0] sm:$0xff]
        %v236 = vld [vmem:[#allocation7 + $0xc8] sm:$0xff]
        %v237 = vld [vmem:[#allocation7 + $0xd0] sm:$0xff]
        %v238 = vld [vmem:[#allocation7 + $0xd8] sm:$0xff]
        %v239 = vld [vmem:[#allocation7 + $0xe0] sm:$0xff]
        %v240 = vld [vmem:[#allocation7 + $0xe8] sm:$0xff]
        %v241 = vld [vmem:[#allocation7 + $0xf0] sm:$0xff]
        %v242 = vld [vmem:[#allocation7 + $0xf8] sm:$0xff]
        %v243 = vld [vmem:[#allocation7 + $0x100] sm:$0xff]
        %v244 = vld [vmem:[#allocation7 + $0x108] sm:$0xff]
        %v245 = vld [vmem:[#allocation7 + $0x110] sm:$0xff]
        %v246 = vld [vmem:[#allocation7 + $0x118] sm:$0xff]
        %v247 = vld [vmem:[#allocation7 + $0x120] sm:$0xff]
        %v248 = vld [vmem:[#allocation7 + $0x128] sm:$0xff]
        %v249 = vld [vmem:[#allocation7 + $0x130] sm:$0xff]
        %v250 = vld [vmem:[#allocation7 + $0x138] sm:$0xff]
        %v251 = vld [vmem:[#allocation7 + $0x140] sm:$0xff]
        %v252 = vld [vmem:[#allocation7 + $0x148] sm:$0xff]
        %v253 = vld [vmem:[#allocation7 + $0x150] sm:$0xff]
        %v254 = vld [vmem:[#allocation7 + $0x158] sm:$0xff]
        %v255 = vld [vmem:[#allocation7 + $0x160] sm:$0xff]
        %v256 = vld [vmem:[#allocation7 + $0x168] sm:$0xff]
        %v257 = vld [vmem:[#allocation7 + $0x170] sm:$0xff]
        %v258 = vld [vmem:[#allocation7 + $0x178] sm:$0xff]
        %v259 = vld [vmem:[#allocation7 + $0x180] sm:$0xff]
        %v260 = vld [vmem:[#allocation7 + $0x188] sm:$0xff]
        %v261 = vld [vmem:[#allocation7 + $0x190] sm:$0xff]
        %v262 = vld [vmem:[#allocation7 + $0x198] sm:$0xff]
        %v263 = vld [vmem:[#allocation7 + $0x1a0] sm:$0xff]
        %v264 = vld [vmem:[#allocation7 + $0x1a8] sm:$0xff]
        %v265 = vld [vmem:[#allocation7 + $0x1b0] sm:$0xff]
        %v266 = vld [vmem:[#allocation7 + $0x1b8] sm:$0xff]
        %v267 = vld [vmem:[#allocation7 + $0x1c0] sm:$0xff]
        %v268 = vld [vmem:[#allocation7 + $0x1c8] sm:$0xff]
        %v269 = vld [vmem:[#allocation7 + $0x1d0] sm:$0xff]
        %v270 = vld [vmem:[#allocation7 + $0x1d8] sm:$0xff]
        %v271 = vld [vmem:[#allocation7 + $0x1e0] sm:$0xff]
        %v272 = vld [vmem:[#allocation7 + $0x1e8] sm:$0xff]
        %v273 = vld [vmem:[#allocation7 + $0x1f0] sm:$0xff]
        %v274 = vld [vmem:[#allocation7 + $0x1f8] sm:$0xff]
        %v275 = vld [vmem:[#allocation9] sm:$0xff]
        %p276 = scmp.eq.s32.totalorder %s21, 0
        // Predicated region
        $region45: #{tpu_custom_call.1} parent=31 // pred_check
          %p277 = pneg %p276
        $region46: #{tpu_custom_call.1} parent=31 // pred_check_branch
          %279 = sbr.rel (%p277) target = $region48
        $region47: #{tpu_custom_call.1} parent=31 // pred_region
          %s280 = smul.u32 %s22, 8
          %s281 = scalar_lea.vmem [#allocation2], %s280
          %vm282 = vcmask 523264
          %283 = vst.msk [vmem:[%s281] sm:$0xff] %vm282, 0.0
        $region48: #{tpu_custom_call.1} parent=31 // pred_fallthru
          _
        %p284 = scmp.gt.s32.totalorder %s21, 0
        // Predicated region
        $region49: #{tpu_custom_call.1} parent=31 // pred_check
          %p285 = pneg %p284
        $region50: #{tpu_custom_call.1} parent=31 // pred_check_branch
          %287 = sbr.rel (%p285) target = $region52
        $region51: #{tpu_custom_call.1} parent=31 // pred_region
          %v288 = vld [vmem:[#allocation10] sm:$0xff]
          %289 = vxpose.xlu0.b32.start [1/16] %v207, 128
          %290 = vxpose.xlu0.b32.cont [2/16] 0.0, 128
          %291 = vxpose.xlu0.b32.cont [3/16] 0.0, 128
          %292 = vxpose.xlu0.b32.cont [4/16] 0.0, 128
          %293 = vxpose.xlu0.b32.cont [5/16] 0.0, 128
          %294 = vxpose.xlu0.b32.cont [6/16] 0.0, 128
          %295 = vxpose.xlu0.b32.cont [7/16] 0.0, 128
          %296 = vxpose.xlu0.b32.cont [8/16] 0.0, 128
          %297 = vxpose.xlu0.b32.cont [9/16] 0.0, 128
          %298 = vxpose.xlu0.b32.cont [10/16] 0.0, 128
          %299 = vxpose.xlu0.b32.cont [11/16] 0.0, 128
          %300 = vxpose.xlu0.b32.cont [12/16] 0.0, 128
          %301 = vxpose.xlu0.b32.cont [13/16] 0.0, 128
          %302 = vxpose.xlu0.b32.cont [14/16] 0.0, 128
          %303 = vxpose.xlu0.b32.cont [15/16] 0.0, 128
          %304 = vxpose.xlu0.b32.end [16/16] 0.0, 128
          %v305 = vpop.trf.xlu0
          %v306 = vpop.trf.xlu0
          %v307 = vpop.trf.xlu0
          %v308 = vpop.trf.xlu0
          %v309 = vpop.trf.xlu0
          %v310 = vpop.trf.xlu0
          %v311 = vpop.trf.xlu0
          %v312 = vpop.trf.xlu0
          %v313 = vpop.trf.xlu0
          %v314 = vpop.trf.xlu0
          %v315 = vpop.trf.xlu0
          %v316 = vpop.trf.xlu0
          %v317 = vpop.trf.xlu0
          %v318 = vpop.trf.xlu0
          %v319 = vpop.trf.xlu0
          %v320 = vpop.trf.xlu0
          %321 = vxpose.xlu0.b32.start [1/16] %v208, 128
          %322 = vxpose.xlu0.b32.cont [2/16] 0.0, 128
          %323 = vxpose.xlu0.b32.cont [3/16] 0.0, 128
          %324 = vxpose.xlu0.b32.cont [4/16] 0.0, 128
          %325 = vxpose.xlu0.b32.cont [5/16] 0.0, 128
          %326 = vxpose.xlu0.b32.cont [6/16] 0.0, 128
          %327 = vxpose.xlu0.b32.cont [7/16] 0.0, 128
          %328 = vxpose.xlu0.b32.cont [8/16] 0.0, 128
          %329 = vxpose.xlu0.b32.cont [9/16] 0.0, 128
          %330 = vxpose.xlu0.b32.cont [10/16] 0.0, 128
          %331 = vxpose.xlu0.b32.cont [11/16] 0.0, 128
          %332 = vxpose.xlu0.b32.cont [12/16] 0.0, 128
          %333 = vxpose.xlu0.b32.cont [13/16] 0.0, 128
          %334 = vxpose.xlu0.b32.cont [14/16] 0.0, 128
          %335 = vxpose.xlu0.b32.cont [15/16] 0.0, 128
          %336 = vxpose.xlu0.b32.end [16/16] 0.0, 128
          %v337 = vpop.trf.xlu0
          %v338 = vpop.trf.xlu0
          %v339 = vpop.trf.xlu0
          %v340 = vpop.trf.xlu0
          %v341 = vpop.trf.xlu0
          %v342 = vpop.trf.xlu0
          %v343 = vpop.trf.xlu0
          %v344 = vpop.trf.xlu0
          %v345 = vpop.trf.xlu0
          %v346 = vpop.trf.xlu0
          %v347 = vpop.trf.xlu0
          %v348 = vpop.trf.xlu0
          %v349 = vpop.trf.xlu0
          %v350 = vpop.trf.xlu0
          %v351 = vpop.trf.xlu0
          %v352 = vpop.trf.xlu0
          %353 = vxpose.xlu0.b32.start [1/16] %v209, 128
          %354 = vxpose.xlu0.b32.cont [2/16] 0.0, 128
          %355 = vxpose.xlu0.b32.cont [3/16] 0.0, 128
          %356 = vxpose.xlu0.b32.cont [4/16] 0.0, 128
          %357 = vxpose.xlu0.b32.cont [5/16] 0.0, 128
          %358 = vxpose.xlu0.b32.cont [6/16] 0.0, 128
          %359 = vxpose.xlu0.b32.cont [7/16] 0.0, 128
          %360 = vxpose.xlu0.b32.cont [8/16] 0.0, 128
          %361 = vxpose.xlu0.b32.cont [9/16] 0.0, 128
          %362 = vxpose.xlu0.b32.cont [10/16] 0.0, 128
          %363 = vxpose.xlu0.b32.cont [11/16] 0.0, 128
          %364 = vxpose.xlu0.b32.cont [12/16] 0.0, 128
          %365 = vxpose.xlu0.b32.cont [13/16] 0.0, 128
          %366 = vxpose.xlu0.b32.cont [14/16] 0.0, 128
          %367 = vxpose.xlu0.b32.cont [15/16] 0.0, 128
          %368 = vxpose.xlu0.b32.end [16/16] 0.0, 128
          %v369 = vpop.trf.xlu0
          %v370 = vpop.trf.xlu0
          %v371 = vpop.trf.xlu0
          %v372 = vpop.trf.xlu0
          %v373 = vpop.trf.xlu0
          %v374 = vpop.trf.xlu0
          %v375 = vpop.trf.xlu0
          %v376 = vpop.trf.xlu0
          %v377 = vpop.trf.xlu0
          %v378 = vpop.trf.xlu0
          %v379 = vpop.trf.xlu0
          %v380 = vpop.trf.xlu0
          %v381 = vpop.trf.xlu0
          %v382 = vpop.trf.xlu0
          %v383 = vpop.trf.xlu0
          %v384 = vpop.trf.xlu0
          %385 = vxpose.xlu0.b32.start [1/16] %v210, 128
          %386 = vxpose.xlu0.b32.cont [2/16] 0.0, 128
          %387 = vxpose.xlu0.b32.cont [3/16] 0.0, 128
          %388 = vxpose.xlu0.b32.cont [4/16] 0.0, 128
          %389 = vxpose.xlu0.b32.cont [5/16] 0.0, 128
          %390 = vxpose.xlu0.b32.cont [6/16] 0.0, 128
          %391 = vxpose.xlu0.b32.cont [7/16] 0.0, 128
          %392 = vxpose.xlu0.b32.cont [8/16] 0.0, 128
          %393 = vxpose.xlu0.b32.cont [9/16] 0.0, 128
          %394 = vxpose.xlu0.b32.cont [10/16] 0.0, 128
          %395 = vxpose.xlu0.b32.cont [11/16] 0.0, 128
          %396 = vxpose.xlu0.b32.cont [12/16] 0.0, 128
          %397 = vxpose.xlu0.b32.cont [13/16] 0.0, 128
          %398 = vxpose.xlu0.b32.cont [14/16] 0.0, 128
          %399 = vxpose.xlu0.b32.cont [15/16] 0.0, 128
          %400 = vxpose.xlu0.b32.end [16/16] 0.0, 128
          %v401 = vpop.trf.xlu0
          %v402 = vpop.trf.xlu0
          %v403 = vpop.trf.xlu0
          %v404 = vpop.trf.xlu0
          %v405 = vpop.trf.xlu0
          %v406 = vpop.trf.xlu0
          %v407 = vpop.trf.xlu0
          %v408 = vpop.trf.xlu0
          %v409 = vpop.trf.xlu0
          %v410 = vpop.trf.xlu0
          %v411 = vpop.trf.xlu0
          %v412 = vpop.trf.xlu0
          %v413 = vpop.trf.xlu0
          %v414 = vpop.trf.xlu0
          %v415 = vpop.trf.xlu0
          %v416 = vpop.trf.xlu0
          %vm417 = vcmask 64512
          %v419 = vsel %vm417, %v305, 0
          %v422 = vsel %vm417, %v306, 0
          %v425 = vsel %vm417, %v307, 0
          %v428 = vsel %vm417, %v308, 0
          %v431 = vsel %vm417, %v309, 0
          %v434 = vsel %vm417, %v310, 0
          %v437 = vsel %vm417, %v311, 0
          %v440 = vsel %vm417, %v312, 0
          %v443 = vsel %vm417, %v313, 0
          %v446 = vsel %vm417, %v314, 0
          %v449 = vsel %vm417, %v315, 0
          %v452 = vsel %vm417, %v316, 0
          %v455 = vsel %vm417, %v317, 0
          %v458 = vsel %vm417, %v318, 0
          %v461 = vsel %vm417, %v319, 0
          %v464 = vsel %vm417, %v320, 0
          %v467 = vsel %vm417, %v337, 0
          %v470 = vsel %vm417, %v338, 0
          %v473 = vsel %vm417, %v339, 0
          %v476 = vsel %vm417, %v340, 0
          %v479 = vsel %vm417, %v341, 0
          %v482 = vsel %vm417, %v342, 0
          %v485 = vsel %vm417, %v343, 0
          %v488 = vsel %vm417, %v344, 0
          %v491 = vsel %vm417, %v345, 0
          %v494 = vsel %vm417, %v346, 0
          %v497 = vsel %vm417, %v347, 0
          %v500 = vsel %vm417, %v348, 0
          %v503 = vsel %vm417, %v349, 0
          %v506 = vsel %vm417, %v350, 0
          %v509 = vsel %vm417, %v351, 0
          %v512 = vsel %vm417, %v352, 0
          %v515 = vsel %vm417, %v369, 0
          %v518 = vsel %vm417, %v370, 0
          %v521 = vsel %vm417, %v371, 0
          %v524 = vsel %vm417, %v372, 0
          %v527 = vsel %vm417, %v373, 0
          %v530 = vsel %vm417, %v374, 0
          %v533 = vsel %vm417, %v375, 0
          %v536 = vsel %vm417, %v376, 0
          %v539 = vsel %vm417, %v377, 0
          %v542 = vsel %vm417, %v378, 0
          %v545 = vsel %vm417, %v379, 0
          %v548 = vsel %vm417, %v380, 0
          %v551 = vsel %vm417, %v381, 0
          %v554 = vsel %vm417, %v382, 0
          %v557 = vsel %vm417, %v383, 0
          %v560 = vsel %vm417, %v384, 0
          %v563 = vsel %vm417, %v401, 0
          %v566 = vsel %vm417, %v402, 0
          %v569 = vsel %vm417, %v403, 0
          %v572 = vsel %vm417, %v404, 0
          %v575 = vsel %vm417, %v405, 0
          %v578 = vsel %vm417, %v406, 0
          %v581 = vsel %vm417, %v407, 0
          %v584 = vsel %vm417, %v408, 0
          %v587 = vsel %vm417, %v409, 0
          %v590 = vsel %vm417, %v410, 0
          %v593 = vsel %vm417, %v411, 0
          %v596 = vsel %vm417, %v412, 0
          %v599 = vsel %vm417, %v413, 0
          %v602 = vsel %vm417, %v414, 0
          %v605 = vsel %vm417, %v415, 0
          %v608 = vsel %vm417, %v416, 0
          %610 = vmatprep.subr.mxu0 0.0
          %611 = vmatpush1.msra.mxu0 0.0
          %612 = vmatprep.subr.mxu0 0.0
          %613 = vmatpush1.msra.mxu0 0.0
          %614 = vmatprep.subr.mxu0 0.0
          %615 = vmatpush1.msra.mxu0 0.0
          %616 = vmatprep.subr.mxu0 0.0
          %617 = vmatpush1.msra.mxu0 0.0
          %618 = vmatprep.subr.mxu0 0.0
          %619 = vmatpush1.msra.mxu0 0.0
          %620 = vmatprep.subr.mxu0 0.0
          %621 = vmatpush1.msra.mxu0 0.0
          %622 = vmatprep.subr.mxu0 0.0
          %623 = vmatpush1.msra.mxu0 0.0
          %624 = vmatprep.subr.mxu0 0.0
          %625 = vmatpush1.msra.mxu0 0.0
          %626 = vmatprep.subr.mxu0 0.0
          %627 = vmatpush1.msra.mxu0 0.0
          %628 = vmatprep.subr.mxu0 0.0
          %629 = vmatpush1.msra.mxu0 0.0
          %630 = vmatprep.subr.mxu0 0.0
          %631 = vmatpush1.msra.mxu0 0.0
          %632 = vmatprep.subr.mxu0 0.0
          %633 = vmatpush1.msra.mxu0 0.0
          %634 = vmatprep.subr.mxu0 0.0
          %635 = vmatpush1.msra.mxu0 0.0
          %636 = vmatprep.subr.mxu0 0.0
          %637 = vmatpush1.msra.mxu0 0.0
          %638 = vmatprep.subr.mxu0 0.0
          %639 = vmatpush1.msra.mxu0 0.0
          %640 = vmatprep.subr.mxu0 0.0
          %641 = vmatpush1.msra.mxu0 %v288
          %642 = vmatprep.subr.mxu0 0.0
          %643 = vmatpush2.msra.mxu0 0.0
          %644 = vmatprep.subr.mxu0 0.0
          %645 = vmatpush2.msra.mxu0 0.0
          %646 = vmatprep.subr.mxu0 0.0
          %647 = vmatpush2.msra.mxu0 0.0
          %648 = vmatprep.subr.mxu0 0.0
          %649 = vmatpush2.msra.mxu0 0.0
          %650 = vmatprep.subr.mxu0 0.0
          %651 = vmatpush2.msra.mxu0 0.0
          %652 = vmatprep.subr.mxu0 0.0
          %653 = vmatpush2.msra.mxu0 0.0
          %654 = vmatprep.subr.mxu0 0.0
          %655 = vmatpush2.msra.mxu0 0.0
          %656 = vmatprep.subr.mxu0 0.0
          %657 = vmatpush2.msra.mxu0 0.0
          %658 = vmatprep.subr.mxu0 0.0
          %659 = vmatpush2.msra.mxu0 0.0
          %660 = vmatprep.subr.mxu0 0.0
          %661 = vmatpush2.msra.mxu0 0.0
          %662 = vmatprep.subr.mxu0 0.0
          %663 = vmatpush2.msra.mxu0 0.0
          %664 = vmatprep.subr.mxu0 0.0
          %665 = vmatpush2.msra.mxu0 0.0
          %666 = vmatprep.subr.mxu0 0.0
          %667 = vmatpush2.msra.mxu0 0.0
          %668 = vmatprep.subr.mxu0 0.0
          %669 = vmatpush2.msra.mxu0 0.0
          %670 = vmatprep.subr.mxu0 0.0
          %671 = vmatpush2.msra.mxu0 0.0
          %672 = vmatprep.subr.mxu0 0.0
          %673 = vmatpush2.msra.mxu0 0.0
          %674 = vmatprep.mubr.f32.mxu0 0.0
          %675 = vmatmul.mubr.f32.gmra.mxu0 %v419
          %v676 = vpop.f32.mrf.mxu0
          %v677 = vadd.f32 0.0, %v676
          %v678 = vpop.f32.mrf.mxu0
          %679 = vmatprep.mubr.f32.mxu0 0.0
          %680 = vmatmul.mubr.f32.gmra.mxu0 %v422
          %v681 = vpop.f32.mrf.mxu0
          %v682 = vadd.f32 0.0, %v681
          %v683 = vpop.f32.mrf.mxu0
          %684 = vmatprep.mubr.f32.mxu0 0.0
          %685 = vmatmul.mubr.f32.gmra.mxu0 %v425
          %v686 = vpop.f32.mrf.mxu0
          %v687 = vadd.f32 0.0, %v686
          %v688 = vpop.f32.mrf.mxu0
          %689 = vmatprep.mubr.f32.mxu0 0.0
          %690 = vmatmul.mubr.f32.gmra.mxu0 %v428
          %v691 = vpop.f32.mrf.mxu0
          %v692 = vadd.f32 0.0, %v691
          %v693 = vpop.f32.mrf.mxu0
          %694 = vmatprep.mubr.f32.mxu0 0.0
          %695 = vmatmul.mubr.f32.gmra.mxu0 %v431
          %v696 = vpop.f32.mrf.mxu0
          %v697 = vadd.f32 0.0, %v696
          %v698 = vpop.f32.mrf.mxu0
          %699 = vmatprep.mubr.f32.mxu0 0.0
          %700 = vmatmul.mubr.f32.gmra.mxu0 %v434
          %v701 = vpop.f32.mrf.mxu0
          %v702 = vadd.f32 0.0, %v701
          %v703 = vpop.f32.mrf.mxu0
          %704 = vmatprep.mubr.f32.mxu0 0.0
          %705 = vmatmul.mubr.f32.gmra.mxu0 %v437
          %v706 = vpop.f32.mrf.mxu0
          %v707 = vadd.f32 0.0, %v706
          %v708 = vpop.f32.mrf.mxu0
          %709 = vmatprep.mubr.f32.mxu0 0.0
          %710 = vmatmul.mubr.f32.gmra.mxu0 %v440
          %v711 = vpop.f32.mrf.mxu0
          %v712 = vadd.f32 0.0, %v711
          %v713 = vpop.f32.mrf.mxu0
          %714 = vmatprep.mubr.f32.mxu0 0.0
          %715 = vmatmul.mubr.f32.gmra.mxu0 %v443
          %v716 = vpop.f32.mrf.mxu0
          %v717 = vadd.f32 0.0, %v716
          %v718 = vpop.f32.mrf.mxu0
          %719 = vmatprep.mubr.f32.mxu0 0.0
          %720 = vmatmul.mubr.f32.gmra.mxu0 %v446
          %v721 = vpop.f32.mrf.mxu0
          %v722 = vadd.f32 0.0, %v721
          %v723 = vpop.f32.mrf.mxu0
          %724 = vmatprep.mubr.f32.mxu0 0.0
          %725 = vmatmul.mubr.f32.gmra.mxu0 %v449
          %v726 = vpop.f32.mrf.mxu0
          %v727 = vadd.f32 0.0, %v726
          %v728 = vpop.f32.mrf.mxu0
          %729 = vmatprep.mubr.f32.mxu0 0.0
          %730 = vmatmul.mubr.f32.gmra.mxu0 %v452
          %v731 = vpop.f32.mrf.mxu0
          %v732 = vadd.f32 0.0, %v731
          %v733 = vpop.f32.mrf.mxu0
          %734 = vmatprep.mubr.f32.mxu0 0.0
          %735 = vmatmul.mubr.f32.gmra.mxu0 %v455
          %v736 = vpop.f32.mrf.mxu0
          %v737 = vadd.f32 0.0, %v736
          %v738 = vpop.f32.mrf.mxu0
          %739 = vmatprep.mubr.f32.mxu0 0.0
          %740 = vmatmul.mubr.f32.gmra.mxu0 %v458
          %v741 = vpop.f32.mrf.mxu0
          %v742 = vadd.f32 0.0, %v741
          %v743 = vpop.f32.mrf.mxu0
          %744 = vmatprep.mubr.f32.mxu0 0.0
          %745 = vmatmul.mubr.f32.gmra.mxu0 %v461
          %v746 = vpop.f32.mrf.mxu0
          %v747 = vadd.f32 0.0, %v746
          %v748 = vpop.f32.mrf.mxu0
          %749 = vmatprep.mubr.f32.mxu0 0.0
          %750 = vmatmul.mubr.f32.gmra.mxu0 %v464
          %v751 = vpop.f32.mrf.mxu0
          %v752 = vadd.f32 0.0, %v751
          %v753 = vpop.f32.mrf.mxu0
          %754 = vmatprep.mubr.f32.mxu0 0.0
          %755 = vmatmul.mubr.f32.gmra.mxu0 %v467
          %v756 = vpop.f32.mrf.mxu0
          %v757 = vadd.f32 0.0, %v756
          %v758 = vpop.f32.mrf.mxu0
          %759 = vmatprep.mubr.f32.mxu0 0.0
          %760 = vmatmul.mubr.f32.gmra.mxu0 %v470
          %v761 = vpop.f32.mrf.mxu0
          %v762 = vadd.f32 0.0, %v761
          %v763 = vpop.f32.mrf.mxu0
          %764 = vmatprep.mubr.f32.mxu0 0.0
          %765 = vmatmul.mubr.f32.gmra.mxu0 %v473
          %v766 = vpop.f32.mrf.mxu0
          %v767 = vadd.f32 0.0, %v766
          %v768 = vpop.f32.mrf.mxu0
          %769 = vmatprep.mubr.f32.mxu0 0.0
          %770 = vmatmul.mubr.f32.gmra.mxu0 %v476
          %v771 = vpop.f32.mrf.mxu0
          %v772 = vadd.f32 0.0, %v771
          %v773 = vpop.f32.mrf.mxu0
          %774 = vmatprep.mubr.f32.mxu0 0.0
          %775 = vmatmul.mubr.f32.gmra.mxu0 %v479
          %v776 = vpop.f32.mrf.mxu0
          %v777 = vadd.f32 0.0, %v776
          %v778 = vpop.f32.mrf.mxu0
          %779 = vmatprep.mubr.f32.mxu0 0.0
          %780 = vmatmul.mubr.f32.gmra.mxu0 %v482
          %v781 = vpop.f32.mrf.mxu0
          %v782 = vadd.f32 0.0, %v781
          %v783 = vpop.f32.mrf.mxu0
          %784 = vmatprep.mubr.f32.mxu0 0.0
          %785 = vmatmul.mubr.f32.gmra.mxu0 %v485
          %v786 = vpop.f32.mrf.mxu0
          %v787 = vadd.f32 0.0, %v786
          %v788 = vpop.f32.mrf.mxu0
          %789 = vmatprep.mubr.f32.mxu0 0.0
          %790 = vmatmul.mubr.f32.gmra.mxu0 %v488
          %v791 = vpop.f32.mrf.mxu0
          %v792 = vadd.f32 0.0, %v791
          %v793 = vpop.f32.mrf.mxu0
          %794 = vmatprep.mubr.f32.mxu0 0.0
          %795 = vmatmul.mubr.f32.gmra.mxu0 %v491
          %v796 = vpop.f32.mrf.mxu0
          %v797 = vadd.f32 0.0, %v796
          %v798 = vpop.f32.mrf.mxu0
          %799 = vmatprep.mubr.f32.mxu0 0.0
          %800 = vmatmul.mubr.f32.gmra.mxu0 %v494
          %v801 = vpop.f32.mrf.mxu0
          %v802 = vadd.f32 0.0, %v801
          %v803 = vpop.f32.mrf.mxu0
          %804 = vmatprep.mubr.f32.mxu0 0.0
          %805 = vmatmul.mubr.f32.gmra.mxu0 %v497
          %v806 = vpop.f32.mrf.mxu0
          %v807 = vadd.f32 0.0, %v806
          %v808 = vpop.f32.mrf.mxu0
          %809 = vmatprep.mubr.f32.mxu0 0.0
          %810 = vmatmul.mubr.f32.gmra.mxu0 %v500
          %v811 = vpop.f32.mrf.mxu0
          %v812 = vadd.f32 0.0, %v811
          %v813 = vpop.f32.mrf.mxu0
          %814 = vmatprep.mubr.f32.mxu0 0.0
          %815 = vmatmul.mubr.f32.gmra.mxu0 %v503
          %v816 = vpop.f32.mrf.mxu0
          %v817 = vadd.f32 0.0, %v816
          %v818 = vpop.f32.mrf.mxu0
          %819 = vmatprep.mubr.f32.mxu0 0.0
          %820 = vmatmul.mubr.f32.gmra.mxu0 %v506
          %v821 = vpop.f32.mrf.mxu0
          %v822 = vadd.f32 0.0, %v821
          %v823 = vpop.f32.mrf.mxu0
          %824 = vmatprep.mubr.f32.mxu0 0.0
          %825 = vmatmul.mubr.f32.gmra.mxu0 %v509
          %v826 = vpop.f32.mrf.mxu0
          %v827 = vadd.f32 0.0, %v826
          %v828 = vpop.f32.mrf.mxu0
          %829 = vmatprep.mubr.f32.mxu0 0.0
          %830 = vmatmul.mubr.f32.gmra.mxu0 %v512
          %v831 = vpop.f32.mrf.mxu0
          %v832 = vadd.f32 0.0, %v831
          %v833 = vpop.f32.mrf.mxu0
          %834 = vmatprep.mubr.f32.mxu0 0.0
          %835 = vmatmul.mubr.f32.gmra.mxu0 %v515
          %v836 = vpop.f32.mrf.mxu0
          %v837 = vadd.f32 0.0, %v836
          %v838 = vpop.f32.mrf.mxu0
          %839 = vmatprep.mubr.f32.mxu0 0.0
          %840 = vmatmul.mubr.f32.gmra.mxu0 %v518
          %v841 = vpop.f32.mrf.mxu0
          %v842 = vadd.f32 0.0, %v841
          %v843 = vpop.f32.mrf.mxu0
          %844 = vmatprep.mubr.f32.mxu0 0.0
          %845 = vmatmul.mubr.f32.gmra.mxu0 %v521
          %v846 = vpop.f32.mrf.mxu0
          %v847 = vadd.f32 0.0, %v846
          %v848 = vpop.f32.mrf.mxu0
          %849 = vmatprep.mubr.f32.mxu0 0.0
          %850 = vmatmul.mubr.f32.gmra.mxu0 %v524
          %v851 = vpop.f32.mrf.mxu0
          %v852 = vadd.f32 0.0, %v851
          %v853 = vpop.f32.mrf.mxu0
          %854 = vmatprep.mubr.f32.mxu0 0.0
          %855 = vmatmul.mubr.f32.gmra.mxu0 %v527
          %v856 = vpop.f32.mrf.mxu0
          %v857 = vadd.f32 0.0, %v856
          %v858 = vpop.f32.mrf.mxu0
          %859 = vmatprep.mubr.f32.mxu0 0.0
          %860 = vmatmul.mubr.f32.gmra.mxu0 %v530
          %v861 = vpop.f32.mrf.mxu0
          %v862 = vadd.f32 0.0, %v861
          %v863 = vpop.f32.mrf.mxu0
          %864 = vmatprep.mubr.f32.mxu0 0.0
          %865 = vmatmul.mubr.f32.gmra.mxu0 %v533
          %v866 = vpop.f32.mrf.mxu0
          %v867 = vadd.f32 0.0, %v866
          %v868 = vpop.f32.mrf.mxu0
          %869 = vmatprep.mubr.f32.mxu0 0.0
          %870 = vmatmul.mubr.f32.gmra.mxu0 %v536
          %v871 = vpop.f32.mrf.mxu0
          %v872 = vadd.f32 0.0, %v871
          %v873 = vpop.f32.mrf.mxu0
          %874 = vmatprep.mubr.f32.mxu0 0.0
          %875 = vmatmul.mubr.f32.gmra.mxu0 %v539
          %v876 = vpop.f32.mrf.mxu0
          %v877 = vadd.f32 0.0, %v876
          %v878 = vpop.f32.mrf.mxu0
          %879 = vmatprep.mubr.f32.mxu0 0.0
          %880 = vmatmul.mubr.f32.gmra.mxu0 %v542
          %v881 = vpop.f32.mrf.mxu0
          %v882 = vadd.f32 0.0, %v881
          %v883 = vpop.f32.mrf.mxu0
          %884 = vmatprep.mubr.f32.mxu0 0.0
          %885 = vmatmul.mubr.f32.gmra.mxu0 %v545
          %v886 = vpop.f32.mrf.mxu0
          %v887 = vadd.f32 0.0, %v886
          %v888 = vpop.f32.mrf.mxu0
          %889 = vmatprep.mubr.f32.mxu0 0.0
          %890 = vmatmul.mubr.f32.gmra.mxu0 %v548
          %v891 = vpop.f32.mrf.mxu0
          %v892 = vadd.f32 0.0, %v891
          %v893 = vpop.f32.mrf.mxu0
          %894 = vmatprep.mubr.f32.mxu0 0.0
          %895 = vmatmul.mubr.f32.gmra.mxu0 %v551
          %v896 = vpop.f32.mrf.mxu0
          %v897 = vadd.f32 0.0, %v896
          %v898 = vpop.f32.mrf.mxu0
          %899 = vmatprep.mubr.f32.mxu0 0.0
          %900 = vmatmul.mubr.f32.gmra.mxu0 %v554
          %v901 = vpop.f32.mrf.mxu0
          %v902 = vadd.f32 0.0, %v901
          %v903 = vpop.f32.mrf.mxu0
          %904 = vmatprep.mubr.f32.mxu0 0.0
          %905 = vmatmul.mubr.f32.gmra.mxu0 %v557
          %v906 = vpop.f32.mrf.mxu0
          %v907 = vadd.f32 0.0, %v906
          %v908 = vpop.f32.mrf.mxu0
          %909 = vmatprep.mubr.f32.mxu0 0.0
          %910 = vmatmul.mubr.f32.gmra.mxu0 %v560
          %v911 = vpop.f32.mrf.mxu0
          %v912 = vadd.f32 0.0, %v911
          %v913 = vpop.f32.mrf.mxu0
          %914 = vmatprep.mubr.f32.mxu0 0.0
          %915 = vmatmul.mubr.f32.gmra.mxu0 %v563
          %v916 = vpop.f32.mrf.mxu0
          %v917 = vadd.f32 0.0, %v916
          %v918 = vpop.f32.mrf.mxu0
          %919 = vmatprep.mubr.f32.mxu0 0.0
          %920 = vmatmul.mubr.f32.gmra.mxu0 %v566
          %v921 = vpop.f32.mrf.mxu0
          %v922 = vadd.f32 0.0, %v921
          %v923 = vpop.f32.mrf.mxu0
          %924 = vmatprep.mubr.f32.mxu0 0.0
          %925 = vmatmul.mubr.f32.gmra.mxu0 %v569
          %v926 = vpop.f32.mrf.mxu0
          %v927 = vadd.f32 0.0, %v926
          %v928 = vpop.f32.mrf.mxu0
          %929 = vmatprep.mubr.f32.mxu0 0.0
          %930 = vmatmul.mubr.f32.gmra.mxu0 %v572
          %v931 = vpop.f32.mrf.mxu0
          %v932 = vadd.f32 0.0, %v931
          %v933 = vpop.f32.mrf.mxu0
          %934 = vmatprep.mubr.f32.mxu0 0.0
          %935 = vmatmul.mubr.f32.gmra.mxu0 %v575
          %v936 = vpop.f32.mrf.mxu0
          %v937 = vadd.f32 0.0, %v936
          %v938 = vpop.f32.mrf.mxu0
          %939 = vmatprep.mubr.f32.mxu0 0.0
          %940 = vmatmul.mubr.f32.gmra.mxu0 %v578
          %v941 = vpop.f32.mrf.mxu0
          %v942 = vadd.f32 0.0, %v941
          %v943 = vpop.f32.mrf.mxu0
          %944 = vmatprep.mubr.f32.mxu0 0.0
          %945 = vmatmul.mubr.f32.gmra.mxu0 %v581
          %v946 = vpop.f32.mrf.mxu0
          %v947 = vadd.f32 0.0, %v946
          %v948 = vpop.f32.mrf.mxu0
          %949 = vmatprep.mubr.f32.mxu0 0.0
          %950 = vmatmul.mubr.f32.gmra.mxu0 %v584
          %v951 = vpop.f32.mrf.mxu0
          %v952 = vadd.f32 0.0, %v951
          %v953 = vpop.f32.mrf.mxu0
          %954 = vmatprep.mubr.f32.mxu0 0.0
          %955 = vmatmul.mubr.f32.gmra.mxu0 %v587
          %v956 = vpop.f32.mrf.mxu0
          %v957 = vadd.f32 0.0, %v956
          %v958 = vpop.f32.mrf.mxu0
          %959 = vmatprep.mubr.f32.mxu0 0.0
          %960 = vmatmul.mubr.f32.gmra.mxu0 %v590
          %v961 = vpop.f32.mrf.mxu0
          %v962 = vadd.f32 0.0, %v961
          %v963 = vpop.f32.mrf.mxu0
          %964 = vmatprep.mubr.f32.mxu0 0.0
          %965 = vmatmul.mubr.f32.gmra.mxu0 %v593
          %v966 = vpop.f32.mrf.mxu0
          %v967 = vadd.f32 0.0, %v966
          %v968 = vpop.f32.mrf.mxu0
          %969 = vmatprep.mubr.f32.mxu0 0.0
          %970 = vmatmul.mubr.f32.gmra.mxu0 %v596
          %v971 = vpop.f32.mrf.mxu0
          %v972 = vadd.f32 0.0, %v971
          %v973 = vpop.f32.mrf.mxu0
          %974 = vmatprep.mubr.f32.mxu0 0.0
          %975 = vmatmul.mubr.f32.gmra.mxu0 %v599
          %v976 = vpop.f32.mrf.mxu0
          %v977 = vadd.f32 0.0, %v976
          %v978 = vpop.f32.mrf.mxu0
          %979 = vmatprep.mubr.f32.mxu0 0.0
          %980 = vmatmul.mubr.f32.gmra.mxu0 %v602
          %v981 = vpop.f32.mrf.mxu0
          %v982 = vadd.f32 0.0, %v981
          %v983 = vpop.f32.mrf.mxu0
          %984 = vmatprep.mubr.f32.mxu0 0.0
          %985 = vmatmul.mubr.f32.gmra.mxu0 %v605
          %v986 = vpop.f32.mrf.mxu0
          %v987 = vadd.f32 0.0, %v986
          %v988 = vpop.f32.mrf.mxu0
          %989 = vmatprep.mubr.f32.mxu0 0.0
          %990 = vmatmul.mubr.f32.gmra.mxu0 %v608
          %v991 = vpop.f32.mrf.mxu0
          %v992 = vadd.f32 0.0, %v991
          %v993 = vpop.f32.mrf.mxu0
          %994 = vdwg.mxu0
          %v995 = vmul.f32 %v211, %v677
          %v996 = vmul.f32 %v212, %v682
          %v997 = vmul.f32 %v213, %v687
          %v998 = vmul.f32 %v214, %v692
          %v999 = vmul.f32 %v215, %v697
          %v1000 = vmul.f32 %v216, %v702
          %v1001 = vmul.f32 %v217, %v707
          %v1002 = vmul.f32 %v218, %v712
          %v1003 = vmul.f32 %v219, %v717
          %v1004 = vmul.f32 %v220, %v722
          %v1005 = vmul.f32 %v221, %v727
          %v1006 = vmul.f32 %v222, %v732
          %v1007 = vmul.f32 %v223, %v737
          %v1008 = vmul.f32 %v224, %v742
          %v1009 = vmul.f32 %v225, %v747
          %v1010 = vmul.f32 %v226, %v752
          %v1011 = vmul.f32 %v227, %v757
          %v1012 = vmul.f32 %v228, %v762
          %v1013 = vmul.f32 %v229, %v767
          %v1014 = vmul.f32 %v230, %v772
          %v1015 = vmul.f32 %v231, %v777
          %v1016 = vmul.f32 %v232, %v782
          %v1017 = vmul.f32 %v233, %v787
          %v1018 = vmul.f32 %v234, %v792
          %v1019 = vmul.f32 %v235, %v797
          %v1020 = vmul.f32 %v236, %v802
          %v1021 = vmul.f32 %v237, %v807
          %v1022 = vmul.f32 %v238, %v812
          %v1023 = vmul.f32 %v239, %v817
          %v1024 = vmul.f32 %v240, %v822
          %v1025 = vmul.f32 %v241, %v827
          %v1026 = vmul.f32 %v242, %v832
          %v1027 = vmul.f32 %v243, %v837
          %v1028 = vmul.f32 %v244, %v842
          %v1029 = vmul.f32 %v245, %v847
          %v1030 = vmul.f32 %v246, %v852
          %v1031 = vmul.f32 %v247, %v857
          %v1032 = vmul.f32 %v248, %v862
          %v1033 = vmul.f32 %v249, %v867
          %v1034 = vmul.f32 %v250, %v872
          %v1035 = vmul.f32 %v251, %v877
          %v1036 = vmul.f32 %v252, %v882
          %v1037 = vmul.f32 %v253, %v887
          %v1038 = vmul.f32 %v254, %v892
          %v1039 = vmul.f32 %v255, %v897
          %v1040 = vmul.f32 %v256, %v902
          %v1041 = vmul.f32 %v257, %v907
          %v1042 = vmul.f32 %v258, %v912
          %v1043 = vmul.f32 %v259, %v917
          %v1044 = vmul.f32 %v260, %v922
          %v1045 = vmul.f32 %v261, %v927
          %v1046 = vmul.f32 %v262, %v932
          %v1047 = vmul.f32 %v263, %v937
          %v1048 = vmul.f32 %v264, %v942
          %v1049 = vmul.f32 %v265, %v947
          %v1050 = vmul.f32 %v266, %v952
          %v1051 = vmul.f32 %v267, %v957
          %v1052 = vmul.f32 %v268, %v962
          %v1053 = vmul.f32 %v269, %v967
          %v1054 = vmul.f32 %v270, %v972
          %v1055 = vmul.f32 %v271, %v977
          %v1056 = vmul.f32 %v272, %v982
          %v1057 = vmul.f32 %v273, %v987
          %v1058 = vmul.f32 %v274, %v992
          %v1059 = vrot.slane %v995, 4
          %v1060 = vadd.f32 %v995, %v1059
          %v1061 = vrot.slane %v1060, 2
          %v1062 = vadd.f32 %v1060, %v1061
          %v1063 = vrot.slane %v1062, 1
          %v1064 = vadd.f32 %v1062, %v1063
          %v1065 = vrot.slane %v996, 4
          %v1066 = vadd.f32 %v996, %v1065
          %v1067 = vrot.slane %v1066, 2
          %v1068 = vadd.f32 %v1066, %v1067
          %v1069 = vrot.slane %v1068, 1
          %v1070 = vadd.f32 %v1068, %v1069
          %v1071 = vrot.slane %v997, 4
          %v1072 = vadd.f32 %v997, %v1071
          %v1073 = vrot.slane %v1072, 2
          %v1074 = vadd.f32 %v1072, %v1073
          %v1075 = vrot.slane %v1074, 1
          %v1076 = vadd.f32 %v1074, %v1075
          %v1077 = vrot.slane %v998, 4
          %v1078 = vadd.f32 %v998, %v1077
          %v1079 = vrot.slane %v1078, 2
          %v1080 = vadd.f32 %v1078, %v1079
          %v1081 = vrot.slane %v1080, 1
          %v1082 = vadd.f32 %v1080, %v1081
          %v1083 = vrot.slane %v999, 4
          %v1084 = vadd.f32 %v999, %v1083
          %v1085 = vrot.slane %v1084, 2
          %v1086 = vadd.f32 %v1084, %v1085
          %v1087 = vrot.slane %v1086, 1
          %v1088 = vadd.f32 %v1086, %v1087
          %v1089 = vrot.slane %v1000, 4
          %v1090 = vadd.f32 %v1000, %v1089
          %v1091 = vrot.slane %v1090, 2
          %v1092 = vadd.f32 %v1090, %v1091
          %v1093 = vrot.slane %v1092, 1
          %v1094 = vadd.f32 %v1092, %v1093
          %v1095 = vrot.slane %v1001, 4
          %v1096 = vadd.f32 %v1001, %v1095
          %v1097 = vrot.slane %v1096, 2
          %v1098 = vadd.f32 %v1096, %v1097
          %v1099 = vrot.slane %v1098, 1
          %v1100 = vadd.f32 %v1098, %v1099
          %v1101 = vrot.slane %v1002, 4
          %v1102 = vadd.f32 %v1002, %v1101
          %v1103 = vrot.slane %v1102, 2
          %v1104 = vadd.f32 %v1102, %v1103
          %v1105 = vrot.slane %v1104, 1
          %v1106 = vadd.f32 %v1104, %v1105
          %v1107 = vrot.slane %v1003, 4
          %v1108 = vadd.f32 %v1003, %v1107
          %v1109 = vrot.slane %v1108, 2
          %v1110 = vadd.f32 %v1108, %v1109
          %v1111 = vrot.slane %v1110, 1
          %v1112 = vadd.f32 %v1110, %v1111
          %v1113 = vrot.slane %v1004, 4
          %v1114 = vadd.f32 %v1004, %v1113
          %v1115 = vrot.slane %v1114, 2
          %v1116 = vadd.f32 %v1114, %v1115
          %v1117 = vrot.slane %v1116, 1
          %v1118 = vadd.f32 %v1116, %v1117
          %v1119 = vrot.slane %v1005, 4
          %v1120 = vadd.f32 %v1005, %v1119
          %v1121 = vrot.slane %v1120, 2
          %v1122 = vadd.f32 %v1120, %v1121
          %v1123 = vrot.slane %v1122, 1
          %v1124 = vadd.f32 %v1122, %v1123
          %v1125 = vrot.slane %v1006, 4
          %v1126 = vadd.f32 %v1006, %v1125
          %v1127 = vrot.slane %v1126, 2
          %v1128 = vadd.f32 %v1126, %v1127
          %v1129 = vrot.slane %v1128, 1
          %v1130 = vadd.f32 %v1128, %v1129
          %v1131 = vrot.slane %v1007, 4
          %v1132 = vadd.f32 %v1007, %v1131
          %v1133 = vrot.slane %v1132, 2
          %v1134 = vadd.f32 %v1132, %v1133
          %v1135 = vrot.slane %v1134, 1
          %v1136 = vadd.f32 %v1134, %v1135
          %v1137 = vrot.slane %v1008, 4
          %v1138 = vadd.f32 %v1008, %v1137
          %v1139 = vrot.slane %v1138, 2
          %v1140 = vadd.f32 %v1138, %v1139
          %v1141 = vrot.slane %v1140, 1
          %v1142 = vadd.f32 %v1140, %v1141
          %v1143 = vrot.slane %v1009, 4
          %v1144 = vadd.f32 %v1009, %v1143
          %v1145 = vrot.slane %v1144, 2
          %v1146 = vadd.f32 %v1144, %v1145
          %v1147 = vrot.slane %v1146, 1
          %v1148 = vadd.f32 %v1146, %v1147
          %v1149 = vrot.slane %v1010, 4
          %v1150 = vadd.f32 %v1010, %v1149
          %v1151 = vrot.slane %v1150, 2
          %v1152 = vadd.f32 %v1150, %v1151
          %v1153 = vrot.slane %v1152, 1
          %v1154 = vadd.f32 %v1152, %v1153
          %v1155 = vrot.slane %v1011, 4
          %v1156 = vadd.f32 %v1011, %v1155
          %v1157 = vrot.slane %v1156, 2
          %v1158 = vadd.f32 %v1156, %v1157
          %v1159 = vrot.slane %v1158, 1
          %v1160 = vadd.f32 %v1158, %v1159
          %v1161 = vrot.slane %v1012, 4
          %v1162 = vadd.f32 %v1012, %v1161
          %v1163 = vrot.slane %v1162, 2
          %v1164 = vadd.f32 %v1162, %v1163
          %v1165 = vrot.slane %v1164, 1
          %v1166 = vadd.f32 %v1164, %v1165
          %v1167 = vrot.slane %v1013, 4
          %v1168 = vadd.f32 %v1013, %v1167
          %v1169 = vrot.slane %v1168, 2
          %v1170 = vadd.f32 %v1168, %v1169
          %v1171 = vrot.slane %v1170, 1
          %v1172 = vadd.f32 %v1170, %v1171
          %v1173 = vrot.slane %v1014, 4
          %v1174 = vadd.f32 %v1014, %v1173
          %v1175 = vrot.slane %v1174, 2
          %v1176 = vadd.f32 %v1174, %v1175
          %v1177 = vrot.slane %v1176, 1
          %v1178 = vadd.f32 %v1176, %v1177
          %v1179 = vrot.slane %v1015, 4
          %v1180 = vadd.f32 %v1015, %v1179
          %v1181 = vrot.slane %v1180, 2
          %v1182 = vadd.f32 %v1180, %v1181
          %v1183 = vrot.slane %v1182, 1
          %v1184 = vadd.f32 %v1182, %v1183
          %v1185 = vrot.slane %v1016, 4
          %v1186 = vadd.f32 %v1016, %v1185
          %v1187 = vrot.slane %v1186, 2
          %v1188 = vadd.f32 %v1186, %v1187
          %v1189 = vrot.slane %v1188, 1
          %v1190 = vadd.f32 %v1188, %v1189
          %v1191 = vrot.slane %v1017, 4
          %v1192 = vadd.f32 %v1017, %v1191
          %v1193 = vrot.slane %v1192, 2
          %v1194 = vadd.f32 %v1192, %v1193
          %v1195 = vrot.slane %v1194, 1
          %v1196 = vadd.f32 %v1194, %v1195
          %v1197 = vrot.slane %v1018, 4
          %v1198 = vadd.f32 %v1018, %v1197
          %v1199 = vrot.slane %v1198, 2
          %v1200 = vadd.f32 %v1198, %v1199
          %v1201 = vrot.slane %v1200, 1
          %v1202 = vadd.f32 %v1200, %v1201
          %v1203 = vrot.slane %v1019, 4
          %v1204 = vadd.f32 %v1019, %v1203
          %v1205 = vrot.slane %v1204, 2
          %v1206 = vadd.f32 %v1204, %v1205
          %v1207 = vrot.slane %v1206, 1
          %v1208 = vadd.f32 %v1206, %v1207
          %v1209 = vrot.slane %v1020, 4
          %v1210 = vadd.f32 %v1020, %v1209
          %v1211 = vrot.slane %v1210, 2
          %v1212 = vadd.f32 %v1210, %v1211
          %v1213 = vrot.slane %v1212, 1
          %v1214 = vadd.f32 %v1212, %v1213
          %v1215 = vrot.slane %v1021, 4
          %v1216 = vadd.f32 %v1021, %v1215
          %v1217 = vrot.slane %v1216, 2
          %v1218 = vadd.f32 %v1216, %v1217
          %v1219 = vrot.slane %v1218, 1
          %v1220 = vadd.f32 %v1218, %v1219
          %v1221 = vrot.slane %v1022, 4
          %v1222 = vadd.f32 %v1022, %v1221
          %v1223 = vrot.slane %v1222, 2
          %v1224 = vadd.f32 %v1222, %v1223
          %v1225 = vrot.slane %v1224, 1
          %v1226 = vadd.f32 %v1224, %v1225
          %v1227 = vrot.slane %v1023, 4
          %v1228 = vadd.f32 %v1023, %v1227
          %v1229 = vrot.slane %v1228, 2
          %v1230 = vadd.f32 %v1228, %v1229
          %v1231 = vrot.slane %v1230, 1
          %v1232 = vadd.f32 %v1230, %v1231
          %v1233 = vrot.slane %v1024, 4
          %v1234 = vadd.f32 %v1024, %v1233
          %v1235 = vrot.slane %v1234, 2
          %v1236 = vadd.f32 %v1234, %v1235
          %v1237 = vrot.slane %v1236, 1
          %v1238 = vadd.f32 %v1236, %v1237
          %v1239 = vrot.slane %v1025, 4
          %v1240 = vadd.f32 %v1025, %v1239
          %v1241 = vrot.slane %v1240, 2
          %v1242 = vadd.f32 %v1240, %v1241
          %v1243 = vrot.slane %v1242, 1
          %v1244 = vadd.f32 %v1242, %v1243
          %v1245 = vrot.slane %v1026, 4
          %v1246 = vadd.f32 %v1026, %v1245
          %v1247 = vrot.slane %v1246, 2
          %v1248 = vadd.f32 %v1246, %v1247
          %v1249 = vrot.slane %v1248, 1
          %v1250 = vadd.f32 %v1248, %v1249
          %v1251 = vrot.slane %v1027, 4
          %v1252 = vadd.f32 %v1027, %v1251
          %v1253 = vrot.slane %v1252, 2
          %v1254 = vadd.f32 %v1252, %v1253
          %v1255 = vrot.slane %v1254, 1
          %v1256 = vadd.f32 %v1254, %v1255
          %v1257 = vrot.slane %v1028, 4
          %v1258 = vadd.f32 %v1028, %v1257
          %v1259 = vrot.slane %v1258, 2
          %v1260 = vadd.f32 %v1258, %v1259
          %v1261 = vrot.slane %v1260, 1
          %v1262 = vadd.f32 %v1260, %v1261
          %v1263 = vrot.slane %v1029, 4
          %v1264 = vadd.f32 %v1029, %v1263
          %v1265 = vrot.slane %v1264, 2
          %v1266 = vadd.f32 %v1264, %v1265
          %v1267 = vrot.slane %v1266, 1
          %v1268 = vadd.f32 %v1266, %v1267
          %v1269 = vrot.slane %v1030, 4
          %v1270 = vadd.f32 %v1030, %v1269
          %v1271 = vrot.slane %v1270, 2
          %v1272 = vadd.f32 %v1270, %v1271
          %v1273 = vrot.slane %v1272, 1
          %v1274 = vadd.f32 %v1272, %v1273
          %v1275 = vrot.slane %v1031, 4
          %v1276 = vadd.f32 %v1031, %v1275
          %v1277 = vrot.slane %v1276, 2
          %v1278 = vadd.f32 %v1276, %v1277
          %v1279 = vrot.slane %v1278, 1
          %v1280 = vadd.f32 %v1278, %v1279
          %v1281 = vrot.slane %v1032, 4
          %v1282 = vadd.f32 %v1032, %v1281
          %v1283 = vrot.slane %v1282, 2
          %v1284 = vadd.f32 %v1282, %v1283
          %v1285 = vrot.slane %v1284, 1
          %v1286 = vadd.f32 %v1284, %v1285
          %v1287 = vrot.slane %v1033, 4
          %v1288 = vadd.f32 %v1033, %v1287
          %v1289 = vrot.slane %v1288, 2
          %v1290 = vadd.f32 %v1288, %v1289
          %v1291 = vrot.slane %v1290, 1
          %v1292 = vadd.f32 %v1290, %v1291
          %v1293 = vrot.slane %v1034, 4
          %v1294 = vadd.f32 %v1034, %v1293
          %v1295 = vrot.slane %v1294, 2
          %v1296 = vadd.f32 %v1294, %v1295
          %v1297 = vrot.slane %v1296, 1
          %v1298 = vadd.f32 %v1296, %v1297
          %v1299 = vrot.slane %v1035, 4
          %v1300 = vadd.f32 %v1035, %v1299
          %v1301 = vrot.slane %v1300, 2
          %v1302 = vadd.f32 %v1300, %v1301
          %v1303 = vrot.slane %v1302, 1
          %v1304 = vadd.f32 %v1302, %v1303
          %v1305 = vrot.slane %v1036, 4
          %v1306 = vadd.f32 %v1036, %v1305
          %v1307 = vrot.slane %v1306, 2
          %v1308 = vadd.f32 %v1306, %v1307
          %v1309 = vrot.slane %v1308, 1
          %v1310 = vadd.f32 %v1308, %v1309
          %v1311 = vrot.slane %v1037, 4
          %v1312 = vadd.f32 %v1037, %v1311
          %v1313 = vrot.slane %v1312, 2
          %v1314 = vadd.f32 %v1312, %v1313
          %v1315 = vrot.slane %v1314, 1
          %v1316 = vadd.f32 %v1314, %v1315
          %v1317 = vrot.slane %v1038, 4
          %v1318 = vadd.f32 %v1038, %v1317
          %v1319 = vrot.slane %v1318, 2
          %v1320 = vadd.f32 %v1318, %v1319
          %v1321 = vrot.slane %v1320, 1
          %v1322 = vadd.f32 %v1320, %v1321
          %v1323 = vrot.slane %v1039, 4
          %v1324 = vadd.f32 %v1039, %v1323
          %v1325 = vrot.slane %v1324, 2
          %v1326 = vadd.f32 %v1324, %v1325
          %v1327 = vrot.slane %v1326, 1
          %v1328 = vadd.f32 %v1326, %v1327
          %v1329 = vrot.slane %v1040, 4
          %v1330 = vadd.f32 %v1040, %v1329
          %v1331 = vrot.slane %v1330, 2
          %v1332 = vadd.f32 %v1330, %v1331
          %v1333 = vrot.slane %v1332, 1
          %v1334 = vadd.f32 %v1332, %v1333
          %v1335 = vrot.slane %v1041, 4
          %v1336 = vadd.f32 %v1041, %v1335
          %v1337 = vrot.slane %v1336, 2
          %v1338 = vadd.f32 %v1336, %v1337
          %v1339 = vrot.slane %v1338, 1
          %v1340 = vadd.f32 %v1338, %v1339
          %v1341 = vrot.slane %v1042, 4
          %v1342 = vadd.f32 %v1042, %v1341
          %v1343 = vrot.slane %v1342, 2
          %v1344 = vadd.f32 %v1342, %v1343
          %v1345 = vrot.slane %v1344, 1
          %v1346 = vadd.f32 %v1344, %v1345
          %v1347 = vrot.slane %v1043, 4
          %v1348 = vadd.f32 %v1043, %v1347
          %v1349 = vrot.slane %v1348, 2
          %v1350 = vadd.f32 %v1348, %v1349
          %v1351 = vrot.slane %v1350, 1
          %v1352 = vadd.f32 %v1350, %v1351
          %v1353 = vrot.slane %v1044, 4
          %v1354 = vadd.f32 %v1044, %v1353
          %v1355 = vrot.slane %v1354, 2
          %v1356 = vadd.f32 %v1354, %v1355
          %v1357 = vrot.slane %v1356, 1
          %v1358 = vadd.f32 %v1356, %v1357
          %v1359 = vrot.slane %v1045, 4
          %v1360 = vadd.f32 %v1045, %v1359
          %v1361 = vrot.slane %v1360, 2
          %v1362 = vadd.f32 %v1360, %v1361
          %v1363 = vrot.slane %v1362, 1
          %v1364 = vadd.f32 %v1362, %v1363
          %v1365 = vrot.slane %v1046, 4
          %v1366 = vadd.f32 %v1046, %v1365
          %v1367 = vrot.slane %v1366, 2
          %v1368 = vadd.f32 %v1366, %v1367
          %v1369 = vrot.slane %v1368, 1
          %v1370 = vadd.f32 %v1368, %v1369
          %v1371 = vrot.slane %v1047, 4
          %v1372 = vadd.f32 %v1047, %v1371
          %v1373 = vrot.slane %v1372, 2
          %v1374 = vadd.f32 %v1372, %v1373
          %v1375 = vrot.slane %v1374, 1
          %v1376 = vadd.f32 %v1374, %v1375
          %v1377 = vrot.slane %v1048, 4
          %v1378 = vadd.f32 %v1048, %v1377
          %v1379 = vrot.slane %v1378, 2
          %v1380 = vadd.f32 %v1378, %v1379
          %v1381 = vrot.slane %v1380, 1
          %v1382 = vadd.f32 %v1380, %v1381
          %v1383 = vrot.slane %v1049, 4
          %v1384 = vadd.f32 %v1049, %v1383
          %v1385 = vrot.slane %v1384, 2
          %v1386 = vadd.f32 %v1384, %v1385
          %v1387 = vrot.slane %v1386, 1
          %v1388 = vadd.f32 %v1386, %v1387
          %v1389 = vrot.slane %v1050, 4
          %v1390 = vadd.f32 %v1050, %v1389
          %v1391 = vrot.slane %v1390, 2
          %v1392 = vadd.f32 %v1390, %v1391
          %v1393 = vrot.slane %v1392, 1
          %v1394 = vadd.f32 %v1392, %v1393
          %v1395 = vrot.slane %v1051, 4
          %v1396 = vadd.f32 %v1051, %v1395
          %v1397 = vrot.slane %v1396, 2
          %v1398 = vadd.f32 %v1396, %v1397
          %v1399 = vrot.slane %v1398, 1
          %v1400 = vadd.f32 %v1398, %v1399
          %v1401 = vrot.slane %v1052, 4
          %v1402 = vadd.f32 %v1052, %v1401
          %v1403 = vrot.slane %v1402, 2
          %v1404 = vadd.f32 %v1402, %v1403
          %v1405 = vrot.slane %v1404, 1
          %v1406 = vadd.f32 %v1404, %v1405
          %v1407 = vrot.slane %v1053, 4
          %v1408 = vadd.f32 %v1053, %v1407
          %v1409 = vrot.slane %v1408, 2
          %v1410 = vadd.f32 %v1408, %v1409
          %v1411 = vrot.slane %v1410, 1
          %v1412 = vadd.f32 %v1410, %v1411
          %v1413 = vrot.slane %v1054, 4
          %v1414 = vadd.f32 %v1054, %v1413
          %v1415 = vrot.slane %v1414, 2
          %v1416 = vadd.f32 %v1414, %v1415
          %v1417 = vrot.slane %v1416, 1
          %v1418 = vadd.f32 %v1416, %v1417
          %v1419 = vrot.slane %v1055, 4
          %v1420 = vadd.f32 %v1055, %v1419
          %v1421 = vrot.slane %v1420, 2
          %v1422 = vadd.f32 %v1420, %v1421
          %v1423 = vrot.slane %v1422, 1
          %v1424 = vadd.f32 %v1422, %v1423
          %v1425 = vrot.slane %v1056, 4
          %v1426 = vadd.f32 %v1056, %v1425
          %v1427 = vrot.slane %v1426, 2
          %v1428 = vadd.f32 %v1426, %v1427
          %v1429 = vrot.slane %v1428, 1
          %v1430 = vadd.f32 %v1428, %v1429
          %v1431 = vrot.slane %v1057, 4
          %v1432 = vadd.f32 %v1057, %v1431
          %v1433 = vrot.slane %v1432, 2
          %v1434 = vadd.f32 %v1432, %v1433
          %v1435 = vrot.slane %v1434, 1
          %v1436 = vadd.f32 %v1434, %v1435
          %v1437 = vrot.slane %v1058, 4
          %v1438 = vadd.f32 %v1058, %v1437
          %v1439 = vrot.slane %v1438, 2
          %v1440 = vadd.f32 %v1438, %v1439
          %v1441 = vrot.slane %v1440, 1
          %v1442 = vadd.f32 %v1440, %v1441
          %vm1507 = vcmask 1041409
          %v1508 = vsel %vm1507, %v1070, %v1064
          %vm1509 = vcmask 1042434
          %v1510 = vsel %vm1509, %v1076, %v1508
          %vm1511 = vcmask 1043459
          %v1512 = vsel %vm1511, %v1082, %v1510
          %vm1513 = vcmask 1044484
          %v1514 = vsel %vm1513, %v1088, %v1512
          %vm1515 = vcmask 1045509
          %v1516 = vsel %vm1515, %v1094, %v1514
          %vm1517 = vcmask 1046534
          %v1518 = vsel %vm1517, %v1100, %v1516
          %vm1519 = vcmask 1047559
          %v1520 = vsel %vm1519, %v1106, %v1518
          %v1521 = vsel %vm1507, %v1118, %v1112
          %v1522 = vsel %vm1509, %v1124, %v1521
          %v1523 = vsel %vm1511, %v1130, %v1522
          %v1524 = vsel %vm1513, %v1136, %v1523
          %v1525 = vsel %vm1515, %v1142, %v1524
          %v1526 = vsel %vm1517, %v1148, %v1525
          %v1527 = vsel %vm1519, %v1154, %v1526
          %v1528 = vsel %vm1507, %v1166, %v1160
          %v1529 = vsel %vm1509, %v1172, %v1528
          %v1530 = vsel %vm1511, %v1178, %v1529
          %v1531 = vsel %vm1513, %v1184, %v1530
          %v1532 = vsel %vm1515, %v1190, %v1531
          %v1533 = vsel %vm1517, %v1196, %v1532
          %v1534 = vsel %vm1519, %v1202, %v1533
          %v1535 = vsel %vm1507, %v1214, %v1208
          %v1536 = vsel %vm1509, %v1220, %v1535
          %v1537 = vsel %vm1511, %v1226, %v1536
          %v1538 = vsel %vm1513, %v1232, %v1537
          %v1539 = vsel %vm1515, %v1238, %v1538
          %v1540 = vsel %vm1517, %v1244, %v1539
          %v1541 = vsel %vm1519, %v1250, %v1540
          %v1542 = vsel %vm1507, %v1262, %v1256
          %v1543 = vsel %vm1509, %v1268, %v1542
          %v1544 = vsel %vm1511, %v1274, %v1543
          %v1545 = vsel %vm1513, %v1280, %v1544
          %v1546 = vsel %vm1515, %v1286, %v1545
          %v1547 = vsel %vm1517, %v1292, %v1546
          %v1548 = vsel %vm1519, %v1298, %v1547
          %v1549 = vsel %vm1507, %v1310, %v1304
          %v1550 = vsel %vm1509, %v1316, %v1549
          %v1551 = vsel %vm1511, %v1322, %v1550
          %v1552 = vsel %vm1513, %v1328, %v1551
          %v1553 = vsel %vm1515, %v1334, %v1552
          %v1554 = vsel %vm1517, %v1340, %v1553
          %v1555 = vsel %vm1519, %v1346, %v1554
          %v1556 = vsel %vm1507, %v1358, %v1352
          %v1557 = vsel %vm1509, %v1364, %v1556
          %v1558 = vsel %vm1511, %v1370, %v1557
          %v1559 = vsel %vm1513, %v1376, %v1558
          %v1560 = vsel %vm1515, %v1382, %v1559
          %v1561 = vsel %vm1517, %v1388, %v1560
          %v1562 = vsel %vm1519, %v1394, %v1561
          %v1563 = vsel %vm1507, %v1406, %v1400
          %v1564 = vsel %vm1509, %v1412, %v1563
          %v1565 = vsel %vm1511, %v1418, %v1564
          %v1566 = vsel %vm1513, %v1424, %v1565
          %v1567 = vsel %vm1515, %v1430, %v1566
          %v1568 = vsel %vm1517, %v1436, %v1567
          %v1569 = vsel %vm1519, %v1442, %v1568
          %1578 = vmatprep.subr.mxu0 0.0
          %1579 = vmatpush1.xpose.msra.mxu0 0.0
          %1580 = vmatprep.subr.mxu0 0.0
          %1581 = vmatpush1.xpose.msra.mxu0 0.0
          %1582 = vmatprep.subr.mxu0 0.0
          %1583 = vmatpush1.xpose.msra.mxu0 0.0
          %1584 = vmatprep.subr.mxu0 0.0
          %1585 = vmatpush1.xpose.msra.mxu0 0.0
          %1586 = vmatprep.subr.mxu0 0.0
          %1587 = vmatpush1.xpose.msra.mxu0 0.0
          %1588 = vmatprep.subr.mxu0 0.0
          %1589 = vmatpush1.xpose.msra.mxu0 0.0
          %1590 = vmatprep.subr.mxu0 0.0
          %1591 = vmatpush1.xpose.msra.mxu0 0.0
          %1592 = vmatprep.subr.mxu0 0.0
          %1593 = vmatpush1.xpose.msra.mxu0 0.0
          %1594 = vmatprep.subr.mxu0 0.0
          %1595 = vmatpush1.xpose.msra.mxu0 %v1569
          %1596 = vmatprep.subr.mxu0 0.0
          %1597 = vmatpush1.xpose.msra.mxu0 %v1562
          %1598 = vmatprep.subr.mxu0 0.0
          %1599 = vmatpush1.xpose.msra.mxu0 %v1555
          %1600 = vmatprep.subr.mxu0 0.0
          %1601 = vmatpush1.xpose.msra.mxu0 %v1548
          %1602 = vmatprep.subr.mxu0 0.0
          %1603 = vmatpush1.xpose.msra.mxu0 %v1541
          %1604 = vmatprep.subr.mxu0 0.0
          %1605 = vmatpush1.xpose.msra.mxu0 %v1534
          %1606 = vmatprep.subr.mxu0 0.0
          %1607 = vmatpush1.xpose.msra.mxu0 %v1527
          %1608 = vmatprep.subr.mxu0 0.0
          %1609 = vmatpush1.xpose.msra.mxu0 %v1520
          %1610 = vmatprep.subr.mxu0 0.0
          %1611 = vmatpush2.xpose.msra.mxu0 0.0
          %1612 = vmatprep.subr.mxu0 0.0
          %1613 = vmatpush2.xpose.msra.mxu0 0.0
          %1614 = vmatprep.subr.mxu0 0.0
          %1615 = vmatpush2.xpose.msra.mxu0 0.0
          %1616 = vmatprep.subr.mxu0 0.0
          %1617 = vmatpush2.xpose.msra.mxu0 0.0
          %1618 = vmatprep.subr.mxu0 0.0
          %1619 = vmatpush2.xpose.msra.mxu0 0.0
          %1620 = vmatprep.subr.mxu0 0.0
          %1621 = vmatpush2.xpose.msra.mxu0 0.0
          %1622 = vmatprep.subr.mxu0 0.0
          %1623 = vmatpush2.xpose.msra.mxu0 0.0
          %1624 = vmatprep.subr.mxu0 0.0
          %1625 = vmatpush2.xpose.msra.mxu0 0.0
          %1626 = vmatprep.subr.mxu0 0.0
          %1627 = vmatpush2.xpose.msra.mxu0 0.0
          %1628 = vmatprep.subr.mxu0 0.0
          %1629 = vmatpush2.xpose.msra.mxu0 0.0
          %1630 = vmatprep.subr.mxu0 0.0
          %1631 = vmatpush2.xpose.msra.mxu0 0.0
          %1632 = vmatprep.subr.mxu0 0.0
          %1633 = vmatpush2.xpose.msra.mxu0 0.0
          %1634 = vmatprep.subr.mxu0 0.0
          %1635 = vmatpush2.xpose.msra.mxu0 0.0
          %1636 = vmatprep.subr.mxu0 0.0
          %1637 = vmatpush2.xpose.msra.mxu0 0.0
          %1638 = vmatprep.subr.mxu0 0.0
          %1639 = vmatpush2.xpose.msra.mxu0 0.0
          %1640 = vmatprep.subr.mxu0 0.0
          %1641 = vmatpush2.xpose.msra.mxu0 0.0
          %1642 = vmatprep.mubr.f32.mxu0 0.0
          %1643 = vmatmul.mubr.f32.gmra.mxu0 %v275
          %v1644 = vpop.f32.mrf.mxu0
          %v1645 = vadd.f32 0.0, %v1644
          %v1646 = vpop.f32.mrf.mxu0
          %1647 = vdwg.mxu0
          %s1648 = smul.u32 %s22, 8
          %s1649 = scalar_lea.vmem [#allocation2], %s1648
          %v1650 = vld [vmem:[%s1649] sm:$0xff]
          %v1651 = vmul.f32 %v1645, 0.125
          %v1652 = vadd.f32 %v1650, %v1651
          %vm1653 = vcmask 523264
          %1654 = vst.msk [vmem:[%s1649] sm:$0xff] %vm1653, %v1652
        $region52: #{tpu_custom_call.1} parent=31 // pred_fallthru
          _
        %s1655 = smul.u32 %s22, 8
        %s1656 = scalar_lea.vmem [#allocation2], %s1655
        %v1657 = vld [vmem:[%s1656] sm:$0xff]
        %vm1658 = vcmask 523264
        %v1659 = vsel %vm1658, %v1657, -inf
        %v1660 = vrot.slane %v1659, 4
        %v1661 = vmax.f32 %v1659, %v1660
        %v1662 = vrot.slane %v1661, 2
        %v1663 = vmax.f32 %v1661, %v1662
        %v1664 = vrot.slane %v1663, 1
        %v1665 = vmax.f32 %v1663, %v1664
        %v1666 = vsub.f32 %v1657, %v1665
        %v1667 = vmul.f32 %v1666, 1.442695
        %v1668 = vpow.pop %v1667
        %v1669 = vsel %vm1658, %v1668, 0.0
        %v1670 = vrot.slane %v1669, 4
        %v1671 = vadd.f32 %v1669, %v1670
        %v1672 = vrot.slane %v1671, 2
        %v1673 = vadd.f32 %v1671, %v1672
        %v1674 = vrot.slane %v1673, 1
        %v1675 = vadd.f32 %v1673, %v1674
        %v1676 = vrcp.pop %v1675
        %v1677 = vmul.f32 %v1668, %v1676
        %1678 = vxpose.xlu0.b32.start [1/16] %v1677, 128
        %1679 = vxpose.xlu0.b32.cont [2/16] 0.0, 128
        %1680 = vxpose.xlu0.b32.cont [3/16] 0.0, 128
        %1681 = vxpose.xlu0.b32.cont [4/16] 0.0, 128
        %1682 = vxpose.xlu0.b32.cont [5/16] 0.0, 128
        %1683 = vxpose.xlu0.b32.cont [6/16] 0.0, 128
        %1684 = vxpose.xlu0.b32.cont [7/16] 0.0, 128
        %1685 = vxpose.xlu0.b32.cont [8/16] 0.0, 128
        %1686 = vxpose.xlu0.b32.cont [9/16] 0.0, 128
        %1687 = vxpose.xlu0.b32.cont [10/16] 0.0, 128
        %1688 = vxpose.xlu0.b32.cont [11/16] 0.0, 128
        %1689 = vxpose.xlu0.b32.cont [12/16] 0.0, 128
        %1690 = vxpose.xlu0.b32.cont [13/16] 0.0, 128
        %1691 = vxpose.xlu0.b32.cont [14/16] 0.0, 128
        %1692 = vxpose.xlu0.b32.cont [15/16] 0.0, 128
        %1693 = vxpose.xlu0.b32.end [16/16] 0.0, 128
        %v1694 = vpop.trf.xlu0
        %v1695 = vpop.trf.xlu0
        %v1696 = vpop.trf.xlu0
        %v1697 = vpop.trf.xlu0
        %v1698 = vpop.trf.xlu0
        %v1699 = vpop.trf.xlu0
        %v1700 = vpop.trf.xlu0
        %v1701 = vpop.trf.xlu0
        %v1702 = vpop.trf.xlu0
        %v1703 = vpop.trf.xlu0
        %v1704 = vpop.trf.xlu0
        %v1705 = vpop.trf.xlu0
        %v1706 = vpop.trf.xlu0
        %v1707 = vpop.trf.xlu0
        %v1708 = vpop.trf.xlu0
        %v1709 = vpop.trf.xlu0
        %vm1710 = vcmask 64512
        %v1712 = vsel %vm1710, %v1694, 0
        %v1715 = vsel %vm1710, %v1695, 0
        %v1718 = vsel %vm1710, %v1696, 0
        %v1721 = vsel %vm1710, %v1697, 0
        %v1724 = vsel %vm1710, %v1698, 0
        %v1727 = vsel %vm1710, %v1699, 0
        %v1730 = vsel %vm1710, %v1700, 0
        %v1733 = vsel %vm1710, %v1701, 0
        %1735 = vmatprep.subr.mxu0 0.0
        %1736 = vmatpush1.msra.mxu0 0.0
        %1737 = vmatprep.subr.mxu0 0.0
        %1738 = vmatpush1.msra.mxu0 0.0
        %1739 = vmatprep.subr.mxu0 0.0
        %1740 = vmatpush1.msra.mxu0 0.0
        %1741 = vmatprep.subr.mxu0 0.0
        %1742 = vmatpush1.msra.mxu0 0.0
        %1743 = vmatprep.subr.mxu0 0.0
        %1744 = vmatpush1.msra.mxu0 0.0
        %1745 = vmatprep.subr.mxu0 0.0
        %1746 = vmatpush1.msra.mxu0 0.0
        %1747 = vmatprep.subr.mxu0 0.0
        %1748 = vmatpush1.msra.mxu0 0.0
        %1749 = vmatprep.subr.mxu0 0.0
        %1750 = vmatpush1.msra.mxu0 0.0
        %1751 = vmatprep.subr.mxu0 0.0
        %1752 = vmatpush1.msra.mxu0 0.0
        %1753 = vmatprep.subr.mxu0 0.0
        %1754 = vmatpush1.msra.mxu0 0.0
        %1755 = vmatprep.subr.mxu0 0.0
        %1756 = vmatpush1.msra.mxu0 0.0
        %1757 = vmatprep.subr.mxu0 0.0
        %1758 = vmatpush1.msra.mxu0 0.0
        %1759 = vmatprep.subr.mxu0 0.0
        %1760 = vmatpush1.msra.mxu0 0.0
        %1761 = vmatprep.subr.mxu0 0.0
        %1762 = vmatpush1.msra.mxu0 0.0
        %1763 = vmatprep.subr.mxu0 0.0
        %1764 = vmatpush1.msra.mxu0 0.0
        %1765 = vmatprep.subr.mxu0 0.0
        %1766 = vmatpush1.msra.mxu0 %v275
        %1767 = vmatprep.subr.mxu0 0.0
        %1768 = vmatpush2.msra.mxu0 0.0
        %1769 = vmatprep.subr.mxu0 0.0
        %1770 = vmatpush2.msra.mxu0 0.0
        %1771 = vmatprep.subr.mxu0 0.0
        %1772 = vmatpush2.msra.mxu0 0.0
        %1773 = vmatprep.subr.mxu0 0.0
        %1774 = vmatpush2.msra.mxu0 0.0
        %1775 = vmatprep.subr.mxu0 0.0
        %1776 = vmatpush2.msra.mxu0 0.0
        %1777 = vmatprep.subr.mxu0 0.0
        %1778 = vmatpush2.msra.mxu0 0.0
        %1779 = vmatprep.subr.mxu0 0.0
        %1780 = vmatpush2.msra.mxu0 0.0
        %1781 = vmatprep.subr.mxu0 0.0
        %1782 = vmatpush2.msra.mxu0 0.0
        %1783 = vmatprep.subr.mxu0 0.0
        %1784 = vmatpush2.msra.mxu0 0.0
        %1785 = vmatprep.subr.mxu0 0.0
        %1786 = vmatpush2.msra.mxu0 0.0
        %1787 = vmatprep.subr.mxu0 0.0
        %1788 = vmatpush2.msra.mxu0 0.0
        %1789 = vmatprep.subr.mxu0 0.0
        %1790 = vmatpush2.msra.mxu0 0.0
        %1791 = vmatprep.subr.mxu0 0.0
        %1792 = vmatpush2.msra.mxu0 0.0
        %1793 = vmatprep.subr.mxu0 0.0
        %1794 = vmatpush2.msra.mxu0 0.0
        %1795 = vmatprep.subr.mxu0 0.0
        %1796 = vmatpush2.msra.mxu0 0.0
        %1797 = vmatprep.subr.mxu0 0.0
        %1798 = vmatpush2.msra.mxu0 0.0
        %1799 = vmatprep.mubr.f32.mxu0 0.0
        %1800 = vmatmul.mubr.f32.gmra.mxu0 %v1712
        %v1801 = vpop.f32.mrf.mxu0
        %v1802 = vadd.f32 0.0, %v1801
        %v1803 = vpop.f32.mrf.mxu0
        %1804 = vmatprep.mubr.f32.mxu0 0.0
        %1805 = vmatmul.mubr.f32.gmra.mxu0 %v1715
        %v1806 = vpop.f32.mrf.mxu0
        %v1807 = vadd.f32 0.0, %v1806
        %v1808 = vpop.f32.mrf.mxu0
        %1809 = vmatprep.mubr.f32.mxu0 0.0
        %1810 = vmatmul.mubr.f32.gmra.mxu0 %v1718
        %v1811 = vpop.f32.mrf.mxu0
        %v1812 = vadd.f32 0.0, %v1811
        %v1813 = vpop.f32.mrf.mxu0
        %1814 = vmatprep.mubr.f32.mxu0 0.0
        %1815 = vmatmul.mubr.f32.gmra.mxu0 %v1721
        %v1816 = vpop.f32.mrf.mxu0
        %v1817 = vadd.f32 0.0, %v1816
        %v1818 = vpop.f32.mrf.mxu0
        %1819 = vmatprep.mubr.f32.mxu0 0.0
        %1820 = vmatmul.mubr.f32.gmra.mxu0 %v1724
        %v1821 = vpop.f32.mrf.mxu0
        %v1822 = vadd.f32 0.0, %v1821
        %v1823 = vpop.f32.mrf.mxu0
        %1824 = vmatprep.mubr.f32.mxu0 0.0
        %1825 = vmatmul.mubr.f32.gmra.mxu0 %v1727
        %v1826 = vpop.f32.mrf.mxu0
        %v1827 = vadd.f32 0.0, %v1826
        %v1828 = vpop.f32.mrf.mxu0
        %1829 = vmatprep.mubr.f32.mxu0 0.0
        %1830 = vmatmul.mubr.f32.gmra.mxu0 %v1730
        %v1831 = vpop.f32.mrf.mxu0
        %v1832 = vadd.f32 0.0, %v1831
        %v1833 = vpop.f32.mrf.mxu0
        %1834 = vmatprep.mubr.f32.mxu0 0.0
        %1835 = vmatmul.mubr.f32.gmra.mxu0 %v1733
        %v1836 = vpop.f32.mrf.mxu0
        %v1837 = vadd.f32 0.0, %v1836
        %v1838 = vpop.f32.mrf.mxu0
        %1839 = vdwg.mxu0
        %v1848 = vcombine.high %v1802, %v1802
        %v1850 = vunpack.c.l.s4 1966171168
        %v1851 = vunpack.c.0.s8 %v1850
        %v1852 = vlaneseq
        %v1853 = vshrl.u32 %v1852, 7
        %v1854 = vsub.s32 %v1851, %v1853
        %v1855 = vrot.slane %v1802, %v1854
        %v1857 = vunpack.c.l.s4 1966171168
        %v1858 = vunpack.c.0.s8 %v1857
        %v1859 = vlaneseq
        %v1860 = vshrl.u32 %v1859, 7
        %v1861 = vsub.s32 %v1858, %v1860
        %v1862 = vrot.slane %v1848, %v1861
        %v1863 = vcombine.high %v1855, %v1855
        %v1864 = vcombine.high %v1862, %v1862
        %v1866 = vunpack.c.l.s4 1966171168
        %v1867 = vunpack.c.0.s8 %v1866
        %v1868 = vlaneseq
        %v1869 = vshrl.u32 %v1868, 7
        %v1870 = vsub.s32 %v1867, %v1869
        %v1871 = vrot.slane %v1855, %v1870
        %v1873 = vunpack.c.l.s4 1966171168
        %v1874 = vunpack.c.0.s8 %v1873
        %v1875 = vlaneseq
        %v1876 = vshrl.u32 %v1875, 7
        %v1877 = vsub.s32 %v1874, %v1876
        %v1878 = vrot.slane %v1862, %v1877
        %v1880 = vunpack.c.l.s4 1966171168
        %v1881 = vunpack.c.0.s8 %v1880
        %v1882 = vlaneseq
        %v1883 = vshrl.u32 %v1882, 7
        %v1884 = vsub.s32 %v1881, %v1883
        %v1885 = vrot.slane %v1863, %v1884
        %v1887 = vunpack.c.l.s4 1966171168
        %v1888 = vunpack.c.0.s8 %v1887
        %v1889 = vlaneseq
        %v1890 = vshrl.u32 %v1889, 7
        %v1891 = vsub.s32 %v1888, %v1890
        %v1892 = vrot.slane %v1864, %v1891
        %v1893 = vcombine.high %v1871, %v1871
        %v1894 = vcombine.high %v1878, %v1878
        %v1895 = vcombine.high %v1885, %v1885
        %v1896 = vcombine.high %v1892, %v1892
        %v1897 = vcombine.high %v1807, %v1807
        %v1899 = vunpack.c.l.s4 1966171168
        %v1900 = vunpack.c.0.s8 %v1899
        %v1901 = vlaneseq
        %v1902 = vshrl.u32 %v1901, 7
        %v1903 = vsub.s32 %v1900, %v1902
        %v1904 = vrot.slane %v1807, %v1903
        %v1906 = vunpack.c.l.s4 1966171168
        %v1907 = vunpack.c.0.s8 %v1906
        %v1908 = vlaneseq
        %v1909 = vshrl.u32 %v1908, 7
        %v1910 = vsub.s32 %v1907, %v1909
        %v1911 = vrot.slane %v1897, %v1910
        %v1912 = vcombine.high %v1904, %v1904
        %v1913 = vcombine.high %v1911, %v1911
        %v1915 = vunpack.c.l.s4 1966171168
        %v1916 = vunpack.c.0.s8 %v1915
        %v1917 = vlaneseq
        %v1918 = vshrl.u32 %v1917, 7
        %v1919 = vsub.s32 %v1916, %v1918
        %v1920 = vrot.slane %v1904, %v1919
        %v1922 = vunpack.c.l.s4 1966171168
        %v1923 = vunpack.c.0.s8 %v1922
        %v1924 = vlaneseq
        %v1925 = vshrl.u32 %v1924, 7
        %v1926 = vsub.s32 %v1923, %v1925
        %v1927 = vrot.slane %v1911, %v1926
        %v1929 = vunpack.c.l.s4 1966171168
        %v1930 = vunpack.c.0.s8 %v1929
        %v1931 = vlaneseq
        %v1932 = vshrl.u32 %v1931, 7
        %v1933 = vsub.s32 %v1930, %v1932
        %v1934 = vrot.slane %v1912, %v1933
        %v1936 = vunpack.c.l.s4 1966171168
        %v1937 = vunpack.c.0.s8 %v1936
        %v1938 = vlaneseq
        %v1939 = vshrl.u32 %v1938, 7
        %v1940 = vsub.s32 %v1937, %v1939
        %v1941 = vrot.slane %v1913, %v1940
        %v1942 = vcombine.high %v1920, %v1920
        %v1943 = vcombine.high %v1927, %v1927
        %v1944 = vcombine.high %v1934, %v1934
        %v1945 = vcombine.high %v1941, %v1941
        %v1946 = vcombine.high %v1812, %v1812
        %v1948 = vunpack.c.l.s4 1966171168
        %v1949 = vunpack.c.0.s8 %v1948
        %v1950 = vlaneseq
        %v1951 = vshrl.u32 %v1950, 7
        %v1952 = vsub.s32 %v1949, %v1951
        %v1953 = vrot.slane %v1812, %v1952
        %v1955 = vunpack.c.l.s4 1966171168
        %v1956 = vunpack.c.0.s8 %v1955
        %v1957 = vlaneseq
        %v1958 = vshrl.u32 %v1957, 7
        %v1959 = vsub.s32 %v1956, %v1958
        %v1960 = vrot.slane %v1946, %v1959
        %v1961 = vcombine.high %v1953, %v1953
        %v1962 = vcombine.high %v1960, %v1960
        %v1964 = vunpack.c.l.s4 1966171168
        %v1965 = vunpack.c.0.s8 %v1964
        %v1966 = vlaneseq
        %v1967 = vshrl.u32 %v1966, 7
        %v1968 = vsub.s32 %v1965, %v1967
        %v1969 = vrot.slane %v1953, %v1968
        %v1971 = vunpack.c.l.s4 1966171168
        %v1972 = vunpack.c.0.s8 %v1971
        %v1973 = vlaneseq
        %v1974 = vshrl.u32 %v1973, 7
        %v1975 = vsub.s32 %v1972, %v1974
        %v1976 = vrot.slane %v1960, %v1975
        %v1978 = vunpack.c.l.s4 1966171168
        %v1979 = vunpack.c.0.s8 %v1978
        %v1980 = vlaneseq
        %v1981 = vshrl.u32 %v1980, 7
        %v1982 = vsub.s32 %v1979, %v1981
        %v1983 = vrot.slane %v1961, %v1982
        %v1985 = vunpack.c.l.s4 1966171168
        %v1986 = vunpack.c.0.s8 %v1985
        %v1987 = vlaneseq
        %v1988 = vshrl.u32 %v1987, 7
        %v1989 = vsub.s32 %v1986, %v1988
        %v1990 = vrot.slane %v1962, %v1989
        %v1991 = vcombine.high %v1969, %v1969
        %v1992 = vcombine.high %v1976, %v1976
        %v1993 = vcombine.high %v1983, %v1983
        %v1994 = vcombine.high %v1990, %v1990
        %v1995 = vcombine.high %v1817, %v1817
        %v1997 = vunpack.c.l.s4 1966171168
        %v1998 = vunpack.c.0.s8 %v1997
        %v1999 = vlaneseq
        %v2000 = vshrl.u32 %v1999, 7
        %v2001 = vsub.s32 %v1998, %v2000
        %v2002 = vrot.slane %v1817, %v2001
        %v2004 = vunpack.c.l.s4 1966171168
        %v2005 = vunpack.c.0.s8 %v2004
        %v2006 = vlaneseq
        %v2007 = vshrl.u32 %v2006, 7
        %v2008 = vsub.s32 %v2005, %v2007
        %v2009 = vrot.slane %v1995, %v2008
        %v2010 = vcombine.high %v2002, %v2002
        %v2011 = vcombine.high %v2009, %v2009
        %v2013 = vunpack.c.l.s4 1966171168
        %v2014 = vunpack.c.0.s8 %v2013
        %v2015 = vlaneseq
        %v2016 = vshrl.u32 %v2015, 7
        %v2017 = vsub.s32 %v2014, %v2016
        %v2018 = vrot.slane %v2002, %v2017
        %v2020 = vunpack.c.l.s4 1966171168
        %v2021 = vunpack.c.0.s8 %v2020
        %v2022 = vlaneseq
        %v2023 = vshrl.u32 %v2022, 7
        %v2024 = vsub.s32 %v2021, %v2023
        %v2025 = vrot.slane %v2009, %v2024
        %v2027 = vunpack.c.l.s4 1966171168
        %v2028 = vunpack.c.0.s8 %v2027
        %v2029 = vlaneseq
        %v2030 = vshrl.u32 %v2029, 7
        %v2031 = vsub.s32 %v2028, %v2030
        %v2032 = vrot.slane %v2010, %v2031
        %v2034 = vunpack.c.l.s4 1966171168
        %v2035 = vunpack.c.0.s8 %v2034
        %v2036 = vlaneseq
        %v2037 = vshrl.u32 %v2036, 7
        %v2038 = vsub.s32 %v2035, %v2037
        %v2039 = vrot.slane %v2011, %v2038
        %v2040 = vcombine.high %v2018, %v2018
        %v2041 = vcombine.high %v2025, %v2025
        %v2042 = vcombine.high %v2032, %v2032
        %v2043 = vcombine.high %v2039, %v2039
        %v2044 = vcombine.high %v1822, %v1822
        %v2046 = vunpack.c.l.s4 1966171168
        %v2047 = vunpack.c.0.s8 %v2046
        %v2048 = vlaneseq
        %v2049 = vshrl.u32 %v2048, 7
        %v2050 = vsub.s32 %v2047, %v2049
        %v2051 = vrot.slane %v1822, %v2050
        %v2053 = vunpack.c.l.s4 1966171168
        %v2054 = vunpack.c.0.s8 %v2053
        %v2055 = vlaneseq
        %v2056 = vshrl.u32 %v2055, 7
        %v2057 = vsub.s32 %v2054, %v2056
        %v2058 = vrot.slane %v2044, %v2057
        %v2059 = vcombine.high %v2051, %v2051
        %v2060 = vcombine.high %v2058, %v2058
        %v2062 = vunpack.c.l.s4 1966171168
        %v2063 = vunpack.c.0.s8 %v2062
        %v2064 = vlaneseq
        %v2065 = vshrl.u32 %v2064, 7
        %v2066 = vsub.s32 %v2063, %v2065
        %v2067 = vrot.slane %v2051, %v2066
        %v2069 = vunpack.c.l.s4 1966171168
        %v2070 = vunpack.c.0.s8 %v2069
        %v2071 = vlaneseq
        %v2072 = vshrl.u32 %v2071, 7
        %v2073 = vsub.s32 %v2070, %v2072
        %v2074 = vrot.slane %v2058, %v2073
        %v2076 = vunpack.c.l.s4 1966171168
        %v2077 = vunpack.c.0.s8 %v2076
        %v2078 = vlaneseq
        %v2079 = vshrl.u32 %v2078, 7
        %v2080 = vsub.s32 %v2077, %v2079
        %v2081 = vrot.slane %v2059, %v2080
        %v2083 = vunpack.c.l.s4 1966171168
        %v2084 = vunpack.c.0.s8 %v2083
        %v2085 = vlaneseq
        %v2086 = vshrl.u32 %v2085, 7
        %v2087 = vsub.s32 %v2084, %v2086
        %v2088 = vrot.slane %v2060, %v2087
        %v2089 = vcombine.high %v2067, %v2067
        %v2090 = vcombine.high %v2074, %v2074
        %v2091 = vcombine.high %v2081, %v2081
        %v2092 = vcombine.high %v2088, %v2088
        %v2093 = vcombine.high %v1827, %v1827
        %v2095 = vunpack.c.l.s4 1966171168
        %v2096 = vunpack.c.0.s8 %v2095
        %v2097 = vlaneseq
        %v2098 = vshrl.u32 %v2097, 7
        %v2099 = vsub.s32 %v2096, %v2098
        %v2100 = vrot.slane %v1827, %v2099
        %v2102 = vunpack.c.l.s4 1966171168
        %v2103 = vunpack.c.0.s8 %v2102
        %v2104 = vlaneseq
        %v2105 = vshrl.u32 %v2104, 7
        %v2106 = vsub.s32 %v2103, %v2105
        %v2107 = vrot.slane %v2093, %v2106
        %v2108 = vcombine.high %v2100, %v2100
        %v2109 = vcombine.high %v2107, %v2107
        %v2111 = vunpack.c.l.s4 1966171168
        %v2112 = vunpack.c.0.s8 %v2111
        %v2113 = vlaneseq
        %v2114 = vshrl.u32 %v2113, 7
        %v2115 = vsub.s32 %v2112, %v2114
        %v2116 = vrot.slane %v2100, %v2115
        %v2118 = vunpack.c.l.s4 1966171168
        %v2119 = vunpack.c.0.s8 %v2118
        %v2120 = vlaneseq
        %v2121 = vshrl.u32 %v2120, 7
        %v2122 = vsub.s32 %v2119, %v2121
        %v2123 = vrot.slane %v2107, %v2122
        %v2125 = vunpack.c.l.s4 1966171168
        %v2126 = vunpack.c.0.s8 %v2125
        %v2127 = vlaneseq
        %v2128 = vshrl.u32 %v2127, 7
        %v2129 = vsub.s32 %v2126, %v2128
        %v2130 = vrot.slane %v2108, %v2129
        %v2132 = vunpack.c.l.s4 1966171168
        %v2133 = vunpack.c.0.s8 %v2132
        %v2134 = vlaneseq
        %v2135 = vshrl.u32 %v2134, 7
        %v2136 = vsub.s32 %v2133, %v2135
        %v2137 = vrot.slane %v2109, %v2136
        %v2138 = vcombine.high %v2116, %v2116
        %v2139 = vcombine.high %v2123, %v2123
        %v2140 = vcombine.high %v2130, %v2130
        %v2141 = vcombine.high %v2137, %v2137
        %v2142 = vcombine.high %v1832, %v1832
        %v2144 = vunpack.c.l.s4 1966171168
        %v2145 = vunpack.c.0.s8 %v2144
        %v2146 = vlaneseq
        %v2147 = vshrl.u32 %v2146, 7
        %v2148 = vsub.s32 %v2145, %v2147
        %v2149 = vrot.slane %v1832, %v2148
        %v2151 = vunpack.c.l.s4 1966171168
        %v2152 = vunpack.c.0.s8 %v2151
        %v2153 = vlaneseq
        %v2154 = vshrl.u32 %v2153, 7
        %v2155 = vsub.s32 %v2152, %v2154
        %v2156 = vrot.slane %v2142, %v2155
        %v2157 = vcombine.high %v2149, %v2149
        %v2158 = vcombine.high %v2156, %v2156
        %v2160 = vunpack.c.l.s4 1966171168
        %v2161 = vunpack.c.0.s8 %v2160
        %v2162 = vlaneseq
        %v2163 = vshrl.u32 %v2162, 7
        %v2164 = vsub.s32 %v2161, %v2163
        %v2165 = vrot.slane %v2149, %v2164
        %v2167 = vunpack.c.l.s4 1966171168
        %v2168 = vunpack.c.0.s8 %v2167
        %v2169 = vlaneseq
        %v2170 = vshrl.u32 %v2169, 7
        %v2171 = vsub.s32 %v2168, %v2170
        %v2172 = vrot.slane %v2156, %v2171
        %v2174 = vunpack.c.l.s4 1966171168
        %v2175 = vunpack.c.0.s8 %v2174
        %v2176 = vlaneseq
        %v2177 = vshrl.u32 %v2176, 7
        %v2178 = vsub.s32 %v2175, %v2177
        %v2179 = vrot.slane %v2157, %v2178
        %v2181 = vunpack.c.l.s4 1966171168
        %v2182 = vunpack.c.0.s8 %v2181
        %v2183 = vlaneseq
        %v2184 = vshrl.u32 %v2183, 7
        %v2185 = vsub.s32 %v2182, %v2184
        %v2186 = vrot.slane %v2158, %v2185
        %v2187 = vcombine.high %v2165, %v2165
        %v2188 = vcombine.high %v2172, %v2172
        %v2189 = vcombine.high %v2179, %v2179
        %v2190 = vcombine.high %v2186, %v2186
        %v2191 = vcombine.high %v1837, %v1837
        %v2193 = vunpack.c.l.s4 1966171168
        %v2194 = vunpack.c.0.s8 %v2193
        %v2195 = vlaneseq
        %v2196 = vshrl.u32 %v2195, 7
        %v2197 = vsub.s32 %v2194, %v2196
        %v2198 = vrot.slane %v1837, %v2197
        %v2200 = vunpack.c.l.s4 1966171168
        %v2201 = vunpack.c.0.s8 %v2200
        %v2202 = vlaneseq
        %v2203 = vshrl.u32 %v2202, 7
        %v2204 = vsub.s32 %v2201, %v2203
        %v2205 = vrot.slane %v2191, %v2204
        %v2206 = vcombine.high %v2198, %v2198
        %v2207 = vcombine.high %v2205, %v2205
        %v2209 = vunpack.c.l.s4 1966171168
        %v2210 = vunpack.c.0.s8 %v2209
        %v2211 = vlaneseq
        %v2212 = vshrl.u32 %v2211, 7
        %v2213 = vsub.s32 %v2210, %v2212
        %v2214 = vrot.slane %v2198, %v2213
        %v2216 = vunpack.c.l.s4 1966171168
        %v2217 = vunpack.c.0.s8 %v2216
        %v2218 = vlaneseq
        %v2219 = vshrl.u32 %v2218, 7
        %v2220 = vsub.s32 %v2217, %v2219
        %v2221 = vrot.slane %v2205, %v2220
        %v2223 = vunpack.c.l.s4 1966171168
        %v2224 = vunpack.c.0.s8 %v2223
        %v2225 = vlaneseq
        %v2226 = vshrl.u32 %v2225, 7
        %v2227 = vsub.s32 %v2224, %v2226
        %v2228 = vrot.slane %v2206, %v2227
        %v2230 = vunpack.c.l.s4 1966171168
        %v2231 = vunpack.c.0.s8 %v2230
        %v2232 = vlaneseq
        %v2233 = vshrl.u32 %v2232, 7
        %v2234 = vsub.s32 %v2231, %v2233
        %v2235 = vrot.slane %v2207, %v2234
        %v2236 = vcombine.high %v2214, %v2214
        %v2237 = vcombine.high %v2221, %v2221
        %v2238 = vcombine.high %v2228, %v2228
        %v2239 = vcombine.high %v2235, %v2235
        %v2240 = vlaneseq
        %v2241 = vshrl.u32 %v2240, 7
        %v2242 = vsub.s32 0, %v2241
        %v2243 = vrot.slane %v1871, %v2242
        %v2244 = vlaneseq
        %v2245 = vshrl.u32 %v2244, 7
        %v2246 = vsub.s32 0, %v2245
        %v2247 = vrot.slane %v1885, %v2246
        %v2248 = vlaneseq
        %v2249 = vshrl.u32 %v2248, 7
        %v2250 = vsub.s32 0, %v2249
        %v2251 = vrot.slane %v1893, %v2250
        %v2252 = vlaneseq
        %v2253 = vshrl.u32 %v2252, 7
        %v2254 = vsub.s32 0, %v2253
        %v2255 = vrot.slane %v1895, %v2254
        %v2256 = vlaneseq
        %v2257 = vshrl.u32 %v2256, 7
        %v2258 = vsub.s32 0, %v2257
        %v2259 = vrot.slane %v1878, %v2258
        %v2260 = vlaneseq
        %v2261 = vshrl.u32 %v2260, 7
        %v2262 = vsub.s32 0, %v2261
        %v2263 = vrot.slane %v1892, %v2262
        %v2264 = vlaneseq
        %v2265 = vshrl.u32 %v2264, 7
        %v2266 = vsub.s32 0, %v2265
        %v2267 = vrot.slane %v1894, %v2266
        %v2268 = vlaneseq
        %v2269 = vshrl.u32 %v2268, 7
        %v2270 = vsub.s32 0, %v2269
        %v2271 = vrot.slane %v1896, %v2270
        %v2272 = vlaneseq
        %v2273 = vshrl.u32 %v2272, 7
        %v2274 = vsub.s32 0, %v2273
        %v2275 = vrot.slane %v1920, %v2274
        %v2276 = vlaneseq
        %v2277 = vshrl.u32 %v2276, 7
        %v2278 = vsub.s32 0, %v2277
        %v2279 = vrot.slane %v1934, %v2278
        %v2280 = vlaneseq
        %v2281 = vshrl.u32 %v2280, 7
        %v2282 = vsub.s32 0, %v2281
        %v2283 = vrot.slane %v1942, %v2282
        %v2284 = vlaneseq
        %v2285 = vshrl.u32 %v2284, 7
        %v2286 = vsub.s32 0, %v2285
        %v2287 = vrot.slane %v1944, %v2286
        %v2288 = vlaneseq
        %v2289 = vshrl.u32 %v2288, 7
        %v2290 = vsub.s32 0, %v2289
        %v2291 = vrot.slane %v1927, %v2290
        %v2292 = vlaneseq
        %v2293 = vshrl.u32 %v2292, 7
        %v2294 = vsub.s32 0, %v2293
        %v2295 = vrot.slane %v1941, %v2294
        %v2296 = vlaneseq
        %v2297 = vshrl.u32 %v2296, 7
        %v2298 = vsub.s32 0, %v2297
        %v2299 = vrot.slane %v1943, %v2298
        %v2300 = vlaneseq
        %v2301 = vshrl.u32 %v2300, 7
        %v2302 = vsub.s32 0, %v2301
        %v2303 = vrot.slane %v1945, %v2302
        %v2304 = vlaneseq
        %v2305 = vshrl.u32 %v2304, 7
        %v2306 = vsub.s32 0, %v2305
        %v2307 = vrot.slane %v1969, %v2306
        %v2308 = vlaneseq
        %v2309 = vshrl.u32 %v2308, 7
        %v2310 = vsub.s32 0, %v2309
        %v2311 = vrot.slane %v1983, %v2310
        %v2312 = vlaneseq
        %v2313 = vshrl.u32 %v2312, 7
        %v2314 = vsub.s32 0, %v2313
        %v2315 = vrot.slane %v1991, %v2314
        %v2316 = vlaneseq
        %v2317 = vshrl.u32 %v2316, 7
        %v2318 = vsub.s32 0, %v2317
        %v2319 = vrot.slane %v1993, %v2318
        %v2320 = vlaneseq
        %v2321 = vshrl.u32 %v2320, 7
        %v2322 = vsub.s32 0, %v2321
        %v2323 = vrot.slane %v1976, %v2322
        %v2324 = vlaneseq
        %v2325 = vshrl.u32 %v2324, 7
        %v2326 = vsub.s32 0, %v2325
        %v2327 = vrot.slane %v1990, %v2326
        %v2328 = vlaneseq
        %v2329 = vshrl.u32 %v2328, 7
        %v2330 = vsub.s32 0, %v2329
        %v2331 = vrot.slane %v1992, %v2330
        %v2332 = vlaneseq
        %v2333 = vshrl.u32 %v2332, 7
        %v2334 = vsub.s32 0, %v2333
        %v2335 = vrot.slane %v1994, %v2334
        %v2336 = vlaneseq
        %v2337 = vshrl.u32 %v2336, 7
        %v2338 = vsub.s32 0, %v2337
        %v2339 = vrot.slane %v2018, %v2338
        %v2340 = vlaneseq
        %v2341 = vshrl.u32 %v2340, 7
        %v2342 = vsub.s32 0, %v2341
        %v2343 = vrot.slane %v2032, %v2342
        %v2344 = vlaneseq
        %v2345 = vshrl.u32 %v2344, 7
        %v2346 = vsub.s32 0, %v2345
        %v2347 = vrot.slane %v2040, %v2346
        %v2348 = vlaneseq
        %v2349 = vshrl.u32 %v2348, 7
        %v2350 = vsub.s32 0, %v2349
        %v2351 = vrot.slane %v2042, %v2350
        %v2352 = vlaneseq
        %v2353 = vshrl.u32 %v2352, 7
        %v2354 = vsub.s32 0, %v2353
        %v2355 = vrot.slane %v2025, %v2354
        %v2356 = vlaneseq
        %v2357 = vshrl.u32 %v2356, 7
        %v2358 = vsub.s32 0, %v2357
        %v2359 = vrot.slane %v2039, %v2358
        %v2360 = vlaneseq
        %v2361 = vshrl.u32 %v2360, 7
        %v2362 = vsub.s32 0, %v2361
        %v2363 = vrot.slane %v2041, %v2362
        %v2364 = vlaneseq
        %v2365 = vshrl.u32 %v2364, 7
        %v2366 = vsub.s32 0, %v2365
        %v2367 = vrot.slane %v2043, %v2366
        %v2368 = vlaneseq
        %v2369 = vshrl.u32 %v2368, 7
        %v2370 = vsub.s32 0, %v2369
        %v2371 = vrot.slane %v2067, %v2370
        %v2372 = vlaneseq
        %v2373 = vshrl.u32 %v2372, 7
        %v2374 = vsub.s32 0, %v2373
        %v2375 = vrot.slane %v2081, %v2374
        %v2376 = vlaneseq
        %v2377 = vshrl.u32 %v2376, 7
        %v2378 = vsub.s32 0, %v2377
        %v2379 = vrot.slane %v2089, %v2378
        %v2380 = vlaneseq
        %v2381 = vshrl.u32 %v2380, 7
        %v2382 = vsub.s32 0, %v2381
        %v2383 = vrot.slane %v2091, %v2382
        %v2384 = vlaneseq
        %v2385 = vshrl.u32 %v2384, 7
        %v2386 = vsub.s32 0, %v2385
        %v2387 = vrot.slane %v2074, %v2386
        %v2388 = vlaneseq
        %v2389 = vshrl.u32 %v2388, 7
        %v2390 = vsub.s32 0, %v2389
        %v2391 = vrot.slane %v2088, %v2390
        %v2392 = vlaneseq
        %v2393 = vshrl.u32 %v2392, 7
        %v2394 = vsub.s32 0, %v2393
        %v2395 = vrot.slane %v2090, %v2394
        %v2396 = vlaneseq
        %v2397 = vshrl.u32 %v2396, 7
        %v2398 = vsub.s32 0, %v2397
        %v2399 = vrot.slane %v2092, %v2398
        %v2400 = vlaneseq
        %v2401 = vshrl.u32 %v2400, 7
        %v2402 = vsub.s32 0, %v2401
        %v2403 = vrot.slane %v2116, %v2402
        %v2404 = vlaneseq
        %v2405 = vshrl.u32 %v2404, 7
        %v2406 = vsub.s32 0, %v2405
        %v2407 = vrot.slane %v2130, %v2406
        %v2408 = vlaneseq
        %v2409 = vshrl.u32 %v2408, 7
        %v2410 = vsub.s32 0, %v2409
        %v2411 = vrot.slane %v2138, %v2410
        %v2412 = vlaneseq
        %v2413 = vshrl.u32 %v2412, 7
        %v2414 = vsub.s32 0, %v2413
        %v2415 = vrot.slane %v2140, %v2414
        %v2416 = vlaneseq
        %v2417 = vshrl.u32 %v2416, 7
        %v2418 = vsub.s32 0, %v2417
        %v2419 = vrot.slane %v2123, %v2418
        %v2420 = vlaneseq
        %v2421 = vshrl.u32 %v2420, 7
        %v2422 = vsub.s32 0, %v2421
        %v2423 = vrot.slane %v2137, %v2422
        %v2424 = vlaneseq
        %v2425 = vshrl.u32 %v2424, 7
        %v2426 = vsub.s32 0, %v2425
        %v2427 = vrot.slane %v2139, %v2426
        %v2428 = vlaneseq
        %v2429 = vshrl.u32 %v2428, 7
        %v2430 = vsub.s32 0, %v2429
        %v2431 = vrot.slane %v2141, %v2430
        %v2432 = vlaneseq
        %v2433 = vshrl.u32 %v2432, 7
        %v2434 = vsub.s32 0, %v2433
        %v2435 = vrot.slane %v2165, %v2434
        %v2436 = vlaneseq
        %v2437 = vshrl.u32 %v2436, 7
        %v2438 = vsub.s32 0, %v2437
        %v2439 = vrot.slane %v2179, %v2438
        %v2440 = vlaneseq
        %v2441 = vshrl.u32 %v2440, 7
        %v2442 = vsub.s32 0, %v2441
        %v2443 = vrot.slane %v2187, %v2442
        %v2444 = vlaneseq
        %v2445 = vshrl.u32 %v2444, 7
        %v2446 = vsub.s32 0, %v2445
        %v2447 = vrot.slane %v2189, %v2446
        %v2448 = vlaneseq
        %v2449 = vshrl.u32 %v2448, 7
        %v2450 = vsub.s32 0, %v2449
        %v2451 = vrot.slane %v2172, %v2450
        %v2452 = vlaneseq
        %v2453 = vshrl.u32 %v2452, 7
        %v2454 = vsub.s32 0, %v2453
        %v2455 = vrot.slane %v2186, %v2454
        %v2456 = vlaneseq
        %v2457 = vshrl.u32 %v2456, 7
        %v2458 = vsub.s32 0, %v2457
        %v2459 = vrot.slane %v2188, %v2458
        %v2460 = vlaneseq
        %v2461 = vshrl.u32 %v2460, 7
        %v2462 = vsub.s32 0, %v2461
        %v2463 = vrot.slane %v2190, %v2462
        %v2464 = vlaneseq
        %v2465 = vshrl.u32 %v2464, 7
        %v2466 = vsub.s32 0, %v2465
        %v2467 = vrot.slane %v2214, %v2466
        %v2468 = vlaneseq
        %v2469 = vshrl.u32 %v2468, 7
        %v2470 = vsub.s32 0, %v2469
        %v2471 = vrot.slane %v2228, %v2470
        %v2472 = vlaneseq
        %v2473 = vshrl.u32 %v2472, 7
        %v2474 = vsub.s32 0, %v2473
        %v2475 = vrot.slane %v2236, %v2474
        %v2476 = vlaneseq
        %v2477 = vshrl.u32 %v2476, 7
        %v2478 = vsub.s32 0, %v2477
        %v2479 = vrot.slane %v2238, %v2478
        %v2480 = vlaneseq
        %v2481 = vshrl.u32 %v2480, 7
        %v2482 = vsub.s32 0, %v2481
        %v2483 = vrot.slane %v2221, %v2482
        %v2484 = vlaneseq
        %v2485 = vshrl.u32 %v2484, 7
        %v2486 = vsub.s32 0, %v2485
        %v2487 = vrot.slane %v2235, %v2486
        %v2488 = vlaneseq
        %v2489 = vshrl.u32 %v2488, 7
        %v2490 = vsub.s32 0, %v2489
        %v2491 = vrot.slane %v2237, %v2490
        %v2492 = vlaneseq
        %v2493 = vshrl.u32 %v2492, 7
        %v2494 = vsub.s32 0, %v2493
        %v2495 = vrot.slane %v2239, %v2494
        %v2560 = vmul.f32 %v211, %v2243
        %v2561 = vmul.f32 %v212, %v2247
        %v2562 = vmul.f32 %v213, %v2251
        %v2563 = vmul.f32 %v214, %v2255
        %v2564 = vmul.f32 %v215, %v2259
        %v2565 = vmul.f32 %v216, %v2263
        %v2566 = vmul.f32 %v217, %v2267
        %v2567 = vmul.f32 %v218, %v2271
        %v2568 = vmul.f32 %v219, %v2275
        %v2569 = vmul.f32 %v220, %v2279
        %v2570 = vmul.f32 %v221, %v2283
        %v2571 = vmul.f32 %v222, %v2287
        %v2572 = vmul.f32 %v223, %v2291
        %v2573 = vmul.f32 %v224, %v2295
        %v2574 = vmul.f32 %v225, %v2299
        %v2575 = vmul.f32 %v226, %v2303
        %v2576 = vmul.f32 %v227, %v2307
        %v2577 = vmul.f32 %v228, %v2311
        %v2578 = vmul.f32 %v229, %v2315
        %v2579 = vmul.f32 %v230, %v2319
        %v2580 = vmul.f32 %v231, %v2323
        %v2581 = vmul.f32 %v232, %v2327
        %v2582 = vmul.f32 %v233, %v2331
        %v2583 = vmul.f32 %v234, %v2335
        %v2584 = vmul.f32 %v235, %v2339
        %v2585 = vmul.f32 %v236, %v2343
        %v2586 = vmul.f32 %v237, %v2347
        %v2587 = vmul.f32 %v238, %v2351
        %v2588 = vmul.f32 %v239, %v2355
        %v2589 = vmul.f32 %v240, %v2359
        %v2590 = vmul.f32 %v241, %v2363
        %v2591 = vmul.f32 %v242, %v2367
        %v2592 = vmul.f32 %v243, %v2371
        %v2593 = vmul.f32 %v244, %v2375
        %v2594 = vmul.f32 %v245, %v2379
        %v2595 = vmul.f32 %v246, %v2383
        %v2596 = vmul.f32 %v247, %v2387
        %v2597 = vmul.f32 %v248, %v2391
        %v2598 = vmul.f32 %v249, %v2395
        %v2599 = vmul.f32 %v250, %v2399
        %v2600 = vmul.f32 %v251, %v2403
        %v2601 = vmul.f32 %v252, %v2407
        %v2602 = vmul.f32 %v253, %v2411
        %v2603 = vmul.f32 %v254, %v2415
        %v2604 = vmul.f32 %v255, %v2419
        %v2605 = vmul.f32 %v256, %v2423
        %v2606 = vmul.f32 %v257, %v2427
        %v2607 = vmul.f32 %v258, %v2431
        %v2608 = vmul.f32 %v259, %v2435
        %v2609 = vmul.f32 %v260, %v2439
        %v2610 = vmul.f32 %v261, %v2443
        %v2611 = vmul.f32 %v262, %v2447
        %v2612 = vmul.f32 %v263, %v2451
        %v2613 = vmul.f32 %v264, %v2455
        %v2614 = vmul.f32 %v265, %v2459
        %v2615 = vmul.f32 %v266, %v2463
        %v2616 = vmul.f32 %v267, %v2467
        %v2617 = vmul.f32 %v268, %v2471
        %v2618 = vmul.f32 %v269, %v2475
        %v2619 = vmul.f32 %v270, %v2479
        %v2620 = vmul.f32 %v271, %v2483
        %v2621 = vmul.f32 %v272, %v2487
        %v2622 = vmul.f32 %v273, %v2491
        %v2623 = vmul.f32 %v274, %v2495
        %2624 = vmatprep.subr.mxu0 0.0
        %2625 = vmatpush1.msra.mxu0 %v2575
        %2626 = vmatprep.subr.mxu0 0.0
        %2627 = vmatpush1.msra.mxu0 %v2574
        %2628 = vmatprep.subr.mxu0 0.0
        %2629 = vmatpush1.msra.mxu0 %v2573
        %2630 = vmatprep.subr.mxu0 0.0
        %2631 = vmatpush1.msra.mxu0 %v2572
        %2632 = vmatprep.subr.mxu0 0.0
        %2633 = vmatpush1.msra.mxu0 %v2571
        %2634 = vmatprep.subr.mxu0 0.0
        %2635 = vmatpush1.msra.mxu0 %v2570
        %2636 = vmatprep.subr.mxu0 0.0
        %2637 = vmatpush1.msra.mxu0 %v2569
        %2638 = vmatprep.subr.mxu0 0.0
        %2639 = vmatpush1.msra.mxu0 %v2568
        %2640 = vmatprep.subr.mxu0 0.0
        %2641 = vmatpush1.msra.mxu0 %v2567
        %2642 = vmatprep.subr.mxu0 0.0
        %2643 = vmatpush1.msra.mxu0 %v2566
        %2644 = vmatprep.subr.mxu0 0.0
        %2645 = vmatpush1.msra.mxu0 %v2565
        %2646 = vmatprep.subr.mxu0 0.0
        %2647 = vmatpush1.msra.mxu0 %v2564
        %2648 = vmatprep.subr.mxu0 0.0
        %2649 = vmatpush1.msra.mxu0 %v2563
        %2650 = vmatprep.subr.mxu0 0.0
        %2651 = vmatpush1.msra.mxu0 %v2562
        %2652 = vmatprep.subr.mxu0 0.0
        %2653 = vmatpush1.msra.mxu0 %v2561
        %2654 = vmatprep.subr.mxu0 0.0
        %2655 = vmatpush1.msra.mxu0 %v2560
        %2656 = vmatprep.subr.mxu0 0.0
        %2657 = vmatpush2.msra.mxu0 %v2591
        %2658 = vmatprep.subr.mxu0 0.0
        %2659 = vmatpush2.msra.mxu0 %v2590
        %2660 = vmatprep.subr.mxu0 0.0
        %2661 = vmatpush2.msra.mxu0 %v2589
        %2662 = vmatprep.subr.mxu0 0.0
        %2663 = vmatpush2.msra.mxu0 %v2588
        %2664 = vmatprep.subr.mxu0 0.0
        %2665 = vmatpush2.msra.mxu0 %v2587
        %2666 = vmatprep.subr.mxu0 0.0
        %2667 = vmatpush2.msra.mxu0 %v2586
        %2668 = vmatprep.subr.mxu0 0.0
        %2669 = vmatpush2.msra.mxu0 %v2585
        %2670 = vmatprep.subr.mxu0 0.0
        %2671 = vmatpush2.msra.mxu0 %v2584
        %2672 = vmatprep.subr.mxu0 0.0
        %2673 = vmatpush2.msra.mxu0 %v2583
        %2674 = vmatprep.subr.mxu0 0.0
        %2675 = vmatpush2.msra.mxu0 %v2582
        %2676 = vmatprep.subr.mxu0 0.0
        %2677 = vmatpush2.msra.mxu0 %v2581
        %2678 = vmatprep.subr.mxu0 0.0
        %2679 = vmatpush2.msra.mxu0 %v2580
        %2680 = vmatprep.subr.mxu0 0.0
        %2681 = vmatpush2.msra.mxu0 %v2579
        %2682 = vmatprep.subr.mxu0 0.0
        %2683 = vmatpush2.msra.mxu0 %v2578
        %2684 = vmatprep.subr.mxu0 0.0
        %2685 = vmatpush2.msra.mxu0 %v2577
        %2686 = vmatprep.subr.mxu0 0.0
        %2687 = vmatpush2.msra.mxu0 %v2576
        %2688 = vmatprep.mubr.f32.mxu0 %v208
        %2689 = vmatmul.mubr.f32.gmra.mxu0 %v207
        %v2690 = vpop.f32.mrf.mxu0
        %v2691 = vadd.f32 0.0, %v2690
        %v2692 = vpop.f32.mrf.mxu0
        %2693 = vdwg.mxu0
        %2694 = vmatprep.subr.mxu0 0.0
        %2695 = vmatpush1.msra.mxu0 %v2607
        %2696 = vmatprep.subr.mxu0 0.0
        %2697 = vmatpush1.msra.mxu0 %v2606
        %2698 = vmatprep.subr.mxu0 0.0
        %2699 = vmatpush1.msra.mxu0 %v2605
        %2700 = vmatprep.subr.mxu0 0.0
        %2701 = vmatpush1.msra.mxu0 %v2604
        %2702 = vmatprep.subr.mxu0 0.0
        %2703 = vmatpush1.msra.mxu0 %v2603
        %2704 = vmatprep.subr.mxu0 0.0
        %2705 = vmatpush1.msra.mxu0 %v2602
        %2706 = vmatprep.subr.mxu0 0.0
        %2707 = vmatpush1.msra.mxu0 %v2601
        %2708 = vmatprep.subr.mxu0 0.0
        %2709 = vmatpush1.msra.mxu0 %v2600
        %2710 = vmatprep.subr.mxu0 0.0
        %2711 = vmatpush1.msra.mxu0 %v2599
        %2712 = vmatprep.subr.mxu0 0.0
        %2713 = vmatpush1.msra.mxu0 %v2598
        %2714 = vmatprep.subr.mxu0 0.0
        %2715 = vmatpush1.msra.mxu0 %v2597
        %2716 = vmatprep.subr.mxu0 0.0
        %2717 = vmatpush1.msra.mxu0 %v2596
        %2718 = vmatprep.subr.mxu0 0.0
        %2719 = vmatpush1.msra.mxu0 %v2595
        %2720 = vmatprep.subr.mxu0 0.0
        %2721 = vmatpush1.msra.mxu0 %v2594
        %2722 = vmatprep.subr.mxu0 0.0
        %2723 = vmatpush1.msra.mxu0 %v2593
        %2724 = vmatprep.subr.mxu0 0.0
        %2725 = vmatpush1.msra.mxu0 %v2592
        %2726 = vmatprep.subr.mxu0 0.0
        %2727 = vmatpush2.msra.mxu0 %v2623
        %2728 = vmatprep.subr.mxu0 0.0
        %2729 = vmatpush2.msra.mxu0 %v2622
        %2730 = vmatprep.subr.mxu0 0.0
        %2731 = vmatpush2.msra.mxu0 %v2621
        %2732 = vmatprep.subr.mxu0 0.0
        %2733 = vmatpush2.msra.mxu0 %v2620
        %2734 = vmatprep.subr.mxu0 0.0
        %2735 = vmatpush2.msra.mxu0 %v2619
        %2736 = vmatprep.subr.mxu0 0.0
        %2737 = vmatpush2.msra.mxu0 %v2618
        %2738 = vmatprep.subr.mxu0 0.0
        %2739 = vmatpush2.msra.mxu0 %v2617
        %2740 = vmatprep.subr.mxu0 0.0
        %2741 = vmatpush2.msra.mxu0 %v2616
        %2742 = vmatprep.subr.mxu0 0.0
        %2743 = vmatpush2.msra.mxu0 %v2615
        %2744 = vmatprep.subr.mxu0 0.0
        %2745 = vmatpush2.msra.mxu0 %v2614
        %2746 = vmatprep.subr.mxu0 0.0
        %2747 = vmatpush2.msra.mxu0 %v2613
        %2748 = vmatprep.subr.mxu0 0.0
        %2749 = vmatpush2.msra.mxu0 %v2612
        %2750 = vmatprep.subr.mxu0 0.0
        %2751 = vmatpush2.msra.mxu0 %v2611
        %2752 = vmatprep.subr.mxu0 0.0
        %2753 = vmatpush2.msra.mxu0 %v2610
        %2754 = vmatprep.subr.mxu0 0.0
        %2755 = vmatpush2.msra.mxu0 %v2609
        %2756 = vmatprep.subr.mxu0 0.0
        %2757 = vmatpush2.msra.mxu0 %v2608
        %2758 = vmatprep.mubr.f32.mxu0 %v210
        %2759 = vmatmul.mubr.f32.gmra.mxu0 %v209
        %v2760 = vpop.f32.mrf.mxu0
        %v2761 = vadd.f32 %v2691, %v2760
        %v2762 = vpop.f32.mrf.mxu0
        %2763 = vdwg.mxu0
        %p2764 = scmp.eq.s32.totalorder %s22, 0
        // Predicated region
        $region53: #{tpu_custom_call.1} parent=31 // pred_check
          %p2765 = pneg %p2764
        $region54: #{tpu_custom_call.1} parent=31 // pred_check_branch
          %2767 = sbr.rel (%p2765) target = $region56
        $region55: #{tpu_custom_call.1} parent=31 // pred_region
          %2768 = vst [vmem:[#allocation3] sm:$0xff] %v2761
        $region56: #{tpu_custom_call.1} parent=31 // pred_fallthru
          _
        %p2769 = scmp.gt.s32.totalorder %s22, 0
        // Predicated region
        $region57: #{tpu_custom_call.1} parent=31 // pred_check
          %p2770 = pneg %p2769
        $region58: #{tpu_custom_call.1} parent=31 // pred_check_branch
          %2772 = sbr.rel (%p2770) target = $region60
        $region59: #{tpu_custom_call.1} parent=31 // pred_region
          %v2773 = vld [vmem:[#allocation3] sm:$0xff]
          %v2774 = vadd.f32 %v2773, %v2761
          %2775 = vst [vmem:[#allocation3] sm:$0xff] %v2774
        $region60: #{tpu_custom_call.1} parent=31 // pred_fallthru
          _
        // Predicated region
        $region61: #{tpu_custom_call.1} parent=31 // pred_check
          %p2776 = pneg %p2764
        $region62: #{tpu_custom_call.1} parent=31 // pred_check_branch
          %2778 = sbr.rel (%p2776) target = $region64
        $region63: #{tpu_custom_call.1} parent=31 // pred_region
          %v2779 = vld [vmem:[#allocation3] sm:$0xff]
          %v2780 = vmul.f32 %v2779, %v2779
          %2781 = vmatprep.subr.mxu0 0.0
          %2782 = vmatpush1.xpose.msra.mxu0 0.0
          %2783 = vmatprep.subr.mxu0 0.0
          %2784 = vmatpush1.xpose.msra.mxu0 0.0
          %2785 = vmatprep.subr.mxu0 0.0
          %2786 = vmatpush1.xpose.msra.mxu0 0.0
          %2787 = vmatprep.subr.mxu0 0.0
          %2788 = vmatpush1.xpose.msra.mxu0 0.0
          %2789 = vmatprep.subr.mxu0 0.0
          %2790 = vmatpush1.xpose.msra.mxu0 0.0
          %2791 = vmatprep.subr.mxu0 0.0
          %2792 = vmatpush1.xpose.msra.mxu0 0.0
          %2793 = vmatprep.subr.mxu0 0.0
          %2794 = vmatpush1.xpose.msra.mxu0 0.0
          %2795 = vmatprep.subr.mxu0 0.0
          %2796 = vmatpush1.xpose.msra.mxu0 0.0
          %2797 = vmatprep.subr.mxu0 0.0
          %2798 = vmatpush1.xpose.msra.mxu0 0.0
          %2799 = vmatprep.subr.mxu0 0.0
          %2800 = vmatpush1.xpose.msra.mxu0 0.0
          %2801 = vmatprep.subr.mxu0 0.0
          %2802 = vmatpush1.xpose.msra.mxu0 0.0
          %2803 = vmatprep.subr.mxu0 0.0
          %2804 = vmatpush1.xpose.msra.mxu0 0.0
          %2805 = vmatprep.subr.mxu0 0.0
          %2806 = vmatpush1.xpose.msra.mxu0 0.0
          %2807 = vmatprep.subr.mxu0 0.0
          %2808 = vmatpush1.xpose.msra.mxu0 0.0
          %2809 = vmatprep.subr.mxu0 0.0
          %2810 = vmatpush1.xpose.msra.mxu0 0.0
          %2811 = vmatprep.subr.mxu0 0.0
          %2812 = vmatpush1.xpose.msra.mxu0 %v275
          %2813 = vmatprep.subr.mxu0 0.0
          %2814 = vmatpush2.xpose.msra.mxu0 0.0
          %2815 = vmatprep.subr.mxu0 0.0
          %2816 = vmatpush2.xpose.msra.mxu0 0.0
          %2817 = vmatprep.subr.mxu0 0.0
          %2818 = vmatpush2.xpose.msra.mxu0 0.0
          %2819 = vmatprep.subr.mxu0 0.0
          %2820 = vmatpush2.xpose.msra.mxu0 0.0
          %2821 = vmatprep.subr.mxu0 0.0
          %2822 = vmatpush2.xpose.msra.mxu0 0.0
          %2823 = vmatprep.subr.mxu0 0.0
          %2824 = vmatpush2.xpose.msra.mxu0 0.0
          %2825 = vmatprep.subr.mxu0 0.0
          %2826 = vmatpush2.xpose.msra.mxu0 0.0
          %2827 = vmatprep.subr.mxu0 0.0
          %2828 = vmatpush2.xpose.msra.mxu0 0.0
          %2829 = vmatprep.subr.mxu0 0.0
          %2830 = vmatpush2.xpose.msra.mxu0 0.0
          %2831 = vmatprep.subr.mxu0 0.0
          %2832 = vmatpush2.xpose.msra.mxu0 0.0
          %2833 = vmatprep.subr.mxu0 0.0
          %2834 = vmatpush2.xpose.msra.mxu0 0.0
          %2835 = vmatprep.subr.mxu0 0.0
          %2836 = vmatpush2.xpose.msra.mxu0 0.0
          %2837 = vmatprep.subr.mxu0 0.0
          %2838 = vmatpush2.xpose.msra.mxu0 0.0
          %2839 = vmatprep.subr.mxu0 0.0
          %2840 = vmatpush2.xpose.msra.mxu0 0.0
          %2841 = vmatprep.subr.mxu0 0.0
          %2842 = vmatpush2.xpose.msra.mxu0 0.0
          %2843 = vmatprep.subr.mxu0 0.0
          %2844 = vmatpush2.xpose.msra.mxu0 0.0
          %2845 = vmatprep.mubr.f32.mxu0 0.0
          %2846 = vmatmul.mubr.f32.gmra.mxu0 %v2780
          %v2847 = vpop.f32.mrf.mxu0
          %v2848 = vadd.f32 0.0, %v2847
          %v2849 = vpop.f32.mrf.mxu0
          %2850 = vdwg.mxu0
          %v2851 = vadd.f32 %v2848, 1.0
          %v2852 = vrcp.pop %v2851
          %v2853 = vmul.f32 %v2848, %v2852
          %v2854 = vadd.f32 %v2848, 1e-09
          %v2855 = vrsqrt.pop %v2854
          %v2856 = vmul.f32 %v2853, %v2855
          %v2858 = vsel %vm1710, %v2856, 0
          %2860 = vmatprep.subr.mxu0 0.0
          %2861 = vmatpush1.msra.mxu0 0.0
          %2862 = vmatprep.subr.mxu0 0.0
          %2863 = vmatpush1.msra.mxu0 0.0
          %2864 = vmatprep.subr.mxu0 0.0
          %2865 = vmatpush1.msra.mxu0 0.0
          %2866 = vmatprep.subr.mxu0 0.0
          %2867 = vmatpush1.msra.mxu0 0.0
          %2868 = vmatprep.subr.mxu0 0.0
          %2869 = vmatpush1.msra.mxu0 0.0
          %2870 = vmatprep.subr.mxu0 0.0
          %2871 = vmatpush1.msra.mxu0 0.0
          %2872 = vmatprep.subr.mxu0 0.0
          %2873 = vmatpush1.msra.mxu0 0.0
          %2874 = vmatprep.subr.mxu0 0.0
          %2875 = vmatpush1.msra.mxu0 0.0
          %2876 = vmatprep.subr.mxu0 0.0
          %2877 = vmatpush1.msra.mxu0 0.0
          %2878 = vmatprep.subr.mxu0 0.0
          %2879 = vmatpush1.msra.mxu0 0.0
          %2880 = vmatprep.subr.mxu0 0.0
          %2881 = vmatpush1.msra.mxu0 0.0
          %2882 = vmatprep.subr.mxu0 0.0
          %2883 = vmatpush1.msra.mxu0 0.0
          %2884 = vmatprep.subr.mxu0 0.0
          %2885 = vmatpush1.msra.mxu0 0.0
          %2886 = vmatprep.subr.mxu0 0.0
          %2887 = vmatpush1.msra.mxu0 0.0
          %2888 = vmatprep.subr.mxu0 0.0
          %2889 = vmatpush1.msra.mxu0 0.0
          %2890 = vmatprep.subr.mxu0 0.0
          %2891 = vmatpush1.msra.mxu0 %v275
          %2892 = vmatprep.subr.mxu0 0.0
          %2893 = vmatpush2.msra.mxu0 0.0
          %2894 = vmatprep.subr.mxu0 0.0
          %2895 = vmatpush2.msra.mxu0 0.0
          %2896 = vmatprep.subr.mxu0 0.0
          %2897 = vmatpush2.msra.mxu0 0.0
          %2898 = vmatprep.subr.mxu0 0.0
          %2899 = vmatpush2.msra.mxu0 0.0
          %2900 = vmatprep.subr.mxu0 0.0
          %2901 = vmatpush2.msra.mxu0 0.0
          %2902 = vmatprep.subr.mxu0 0.0
          %2903 = vmatpush2.msra.mxu0 0.0
          %2904 = vmatprep.subr.mxu0 0.0
          %2905 = vmatpush2.msra.mxu0 0.0
          %2906 = vmatprep.subr.mxu0 0.0
          %2907 = vmatpush2.msra.mxu0 0.0
          %2908 = vmatprep.subr.mxu0 0.0
          %2909 = vmatpush2.msra.mxu0 0.0
          %2910 = vmatprep.subr.mxu0 0.0
          %2911 = vmatpush2.msra.mxu0 0.0
          %2912 = vmatprep.subr.mxu0 0.0
          %2913 = vmatpush2.msra.mxu0 0.0
          %2914 = vmatprep.subr.mxu0 0.0
          %2915 = vmatpush2.msra.mxu0 0.0
          %2916 = vmatprep.subr.mxu0 0.0
          %2917 = vmatpush2.msra.mxu0 0.0
          %2918 = vmatprep.subr.mxu0 0.0
          %2919 = vmatpush2.msra.mxu0 0.0
          %2920 = vmatprep.subr.mxu0 0.0
          %2921 = vmatpush2.msra.mxu0 0.0
          %2922 = vmatprep.subr.mxu0 0.0
          %2923 = vmatpush2.msra.mxu0 0.0
          %2924 = vmatprep.mubr.f32.mxu0 0.0
          %2925 = vmatmul.mubr.f32.gmra.mxu0 %v2858
          %v2926 = vpop.f32.mrf.mxu0
          %v2927 = vadd.f32 0.0, %v2926
          %v2928 = vpop.f32.mrf.mxu0
          %2929 = vdwg.mxu0
          %v2930 = vmul.f32 %v2779, %v2927
          %2931 = vst [vmem:[#allocation10] sm:$0xff] %v2930
        $region64: #{tpu_custom_call.1} parent=31 // pred_fallthru
          _
        // Predicated region
        $region65: #{tpu_custom_call.1} parent=31 // pred_check
          %p2932 = pneg %p115
        $region66: #{tpu_custom_call.1} parent=31 // pred_check_branch
          %2934 = sbr.rel (%p2932) target = $region68
        $region67: #{tpu_custom_call.1} parent=31 // pred_region
          %s2936 = ssub.s32 128, 128
          %2937 = vsyncadd [#allocation6], %s2936
          %s2939 = sshll.u32 [#allocation10], 4
          %s2940 = int_to_ptr.vmem [resolvable:$true] %s2939
          %2942 = dma.vmem_to_hbm [thread:$0]  %s2940, 128, %s3, [#allocation6]
        $region68: #{tpu_custom_call.1} parent=31 // pred_fallthru
          _
        // Predicated region
        $region69: #{tpu_custom_call.1} parent=31 // pred_check
          %p2943 = pneg %p115
        $region70: #{tpu_custom_call.1} parent=31 // pred_check_branch
          %2945 = sbr.rel (%p2943) target = $region72
        $region71: #{tpu_custom_call.1} parent=31 // pred_region
          %2946 = dma.done [#allocation6], 128
        $region72: #{tpu_custom_call.1} parent=31 // pred_fallthru
          _
      $region32: #{tpu_custom_call.1} parent=5 // pred_fallthru
        _
      %p2947 = scmp.le.s32.totalorder 2, %s12
      // Predicated region
      $region73: #{tpu_custom_call.1} parent=5 // pred_check
        %p2948 = pneg %p2947
      $region74: #{tpu_custom_call.1} parent=5 // pred_check_branch
        %2950 = sbr.rel (%p2948) target = $region76
      $region75: #{tpu_custom_call.1} parent=5 // pred_region
        %s2951 = ssub.s32 %s12, 2
      $region76: #{tpu_custom_call.1} parent=5 // pred_fallthru
        _
    $region6: #{tpu_custom_call.1} parent=1 // loop_footer
      %s16 = sadd.s32 1, %s12
    $region7: #{tpu_custom_call.1} parent=1 // loop_footer_branch
      %11 = sbr.rel target = $region3
    $region8: #{tpu_custom_call.1} parent=1 // loop_exit
      _
    %2952 = vsyncpa [#allocation5], 1
    %s2953 = scalar_lea.sflag [#allocation5], 1
    %2954 = vsyncpa %s2953, 1
    %2955 = vsyncpa [#allocation8], 1
    %2956 = vsyncpa [#allocation6], 1
    %s2957 = scalar_lea.sflag [#allocation6], 1
    %2958 = vsyncpa %s2957, 1

</llo_original>
